<compile_context>
chip_gen: v5e
topology: v5e:2x2
jax: 0.10.0
libtpu: 0.0.40
codegen_flags: <defaults>
</compile_context>

<pallas_src>
import functools

import jax
import jax.numpy as jnp
from jax.experimental import pallas as pl
from jax.experimental.pallas import tpu as pltpu

EPS = 1e-5  # nn.InstanceNorm2d default


def resnet_block_kernel(x_ref, w1_ref, w2_ref, mask_ref, o_ref, *, W,
                        compute_dtype):
    """Fused ResnetBlock forward for one sample.

    x_ref   : (C, H*W)   f32   NCHW image flattened over space (lane-dense).
    w*_ref  : (9, C, C)  compute_dtype, tap-major weights, tap = dy*3 + dx,
              w_ref[tap, co, ci] == torch_weight[co, ci, dy, dx].
    mask_ref: (4, H*W)   f32   border masks [top, bottom, left, right].
    o_ref   : (C, H*W)   f32   x + block(x).
    """
    C, S = x_ref.shape
    x = x_ref[...]

    m = mask_ref[...]
    top = m[0:1, :] > 0.5        # row 0
    bottom = m[1:2, :] > 0.5     # row H-1
    left = m[2:3, :] > 0.5       # col 0
    right = m[3:4, :] > 0.5      # col W-1

    def conv3x3_reflect_instnorm(a, w_ref):
        """IN(Conv3x3(ReflectPad1(a))), a: (C, S) f32 -> (C, S) f32."""
        y = jnp.zeros((C, S), jnp.float32)
        for ox in (-1, 0, 1):
            # Column-reflected tile, shared by the 3 row offsets:
            #   cf[c, q] == a[c, row(q)*W + reflect(col(q) + ox)]
            if ox == 0:
                cf = a
            else:
                cbase = pltpu.roll(a, (-ox) % S, axis=1)        # a[q + ox]
                ccorr = pltpu.roll(a, ox % S, axis=1)           # a[q - ox]
                cmask = left if ox == -1 else right
                cf = jnp.where(cmask, ccorr, cbase)
            for oy in (-1, 0, 1):
                # Row-reflected tap (corners come out right by composition):
                #   tap[c, q] == a[c, reflect(row(q)+oy)*W + reflect(col(q)+ox)]
                if oy == 0:
                    tap = cf
                else:
                    rbase = pltpu.roll(cf, (-oy * W) % S, axis=1)  # cf[q+oy*W]
                    rcorr = pltpu.roll(cf, (oy * W) % S, axis=1)   # cf[q-oy*W]
                    rmask = top if oy == -1 else bottom
                    tap = jnp.where(rmask, rcorr, rbase)
                t = (oy + 1) * 3 + (ox + 1)
                # Accumulating MXU matmul: bf16 operands, f32 accumulation.
                y = y + jnp.dot(w_ref[t], tap.astype(compute_dtype),
                                preferred_element_type=jnp.float32)
        # InstanceNorm2d (non-affine), single pass over y, f32 stats.
        mean = jnp.mean(y, axis=1, keepdims=True)
        mean_sq = jnp.mean(y * y, axis=1, keepdims=True)
        var = jnp.maximum(mean_sq - mean * mean, 0.0)
        return (y - mean) * jax.lax.rsqrt(var + EPS)

    h = jnp.maximum(conv3x3_reflect_instnorm(x, w1_ref), 0.0)   # Conv-IN-ReLU
    y2 = conv3x3_reflect_instnorm(h, w2_ref)                    # Conv-IN
    o_ref[...] = (x + y2).astype(o_ref.dtype)                   # residual add


def resnet_block_forward(x, w1, b1, w2, b2, *, matmul_dtype=jnp.bfloat16):
    """x: (B, C, H, W) f32 NCHW.  w*: (C, C, 3, 3) PyTorch OIHW.  b*: (C,).

    Biases are accepted for interface fidelity but unused: a constant
    per-channel bias is exactly cancelled by the non-affine InstanceNorm that
    immediately follows each conv.
    """
    del b1, b2
    B, C, H, W = x.shape
    S = H * W

    # Tap-major weights, cast once (MXU operands only).
    w1_t = jnp.transpose(w1, (2, 3, 0, 1)).reshape(9, C, C).astype(matmul_dtype)
    w2_t = jnp.transpose(w2, (2, 3, 0, 1)).reshape(9, C, C).astype(matmul_dtype)
    x_flat = x.reshape(B, C, S)          # free view: NCHW is contiguous

    # Precomputed border masks (hoisted out of the kernel / grid loop).
    pos = jnp.arange(S, dtype=jnp.int32)
    col = pos % W
    masks = jnp.stack([pos < W,            # top    (row 0)
                       pos >= S - W,       # bottom (row H-1)
                       col == 0,           # left   (col 0)
                       col == W - 1],      # right  (col W-1)
                      axis=0).astype(jnp.float32)             # (4, S)

    out_flat = pl.pallas_call(
        functools.partial(resnet_block_kernel, W=W, compute_dtype=matmul_dtype),
        out_shape=jax.ShapeDtypeStruct((B, C, S), jnp.float32),
        grid=(B,),
        in_specs=[
            pl.BlockSpec((None, C, S), lambda b: (b, 0, 0)),
            pl.BlockSpec((9, C, C), lambda b: (0, 0, 0)),
            pl.BlockSpec((9, C, C), lambda b: (0, 0, 0)),
            pl.BlockSpec((4, S), lambda b: (0, 0)),
        ],
        out_specs=pl.BlockSpec((None, C, S), lambda b: (b, 0, 0)),
        compiler_params=pltpu.CompilerParams(
            dimension_semantics=("parallel",),
            vmem_limit_bytes=48 * 1024 * 1024),
    )(x_flat, w1_t, w2_t, masks)
    return out_flat.reshape(B, C, H, W)


# ---------------------------------------------------------------------------
# Pure-JAX reference (independent of the kernel math; keeps the bias to show
# it is a no-op under non-affine InstanceNorm).
# ---------------------------------------------------------------------------
def _conv_in_ref(x, w, b):
    xpad = jnp.pad(x, ((0, 0), (0, 0), (1, 1), (1, 1)), mode="reflect")
    y = jax.lax.conv_general_dilated(
        xpad, w, window_strides=(1, 1), padding="VALID",
        dimension_numbers=("NCHW", "OIHW", "NCHW"))
    y = y + b[None, :, None, None]
    mean = jnp.mean(y, axis=(2, 3), keepdims=True)
    var = jnp.mean((y - mean) ** 2, axis=(2, 3), keepdims=True)
    return (y - mean) * jax.lax.rsqrt(var + EPS)


def resnet_block_ref(x, w1, b1, w2, b2):
    h = jnp.maximum(_conv_in_ref(x, w1, b1), 0.0)
    return x + _conv_in_ref(h, w2, b2)


if __name__ == "__main__":
    B, C, H, W = 2, 8, 16, 16      # dim = 8, H*W = 256 (lane-dense)
    key = jax.random.PRNGKey(0)
    kx, kw1, kb1, kw2, kb2 = jax.random.split(key, 5)

    x = jax.random.normal(kx, (B, C, H, W), dtype=jnp.float32)
    fan_in = 9 * C
    w1 = jax.random.normal(kw1, (C, C, 3, 3), jnp.float32) / jnp.sqrt(fan_in)
    b1 = jax.random.normal(kb1, (C,), jnp.float32) * 0.1
    w2 = jax.random.normal(kw2, (C, C, 3, 3), jnp.float32) / jnp.sqrt(fan_in)
    b2 = jax.random.normal(kb2, (C,), jnp.float32) * 0.1

    ref = resnet_block_ref(x, w1, b1, w2, b2)

    # Exact-math check: f32 MXU operands (validates reflect/IN/residual math).
    out_f32 = jax.block_until_ready(
        jax.jit(functools.partial(resnet_block_forward,
                                  matmul_dtype=jnp.float32))(x, w1, b1, w2, b2))
    err_f32 = float(jnp.max(jnp.abs(out_f32 - ref)))
    assert out_f32.shape == x.shape
    assert err_f32 < 1e-2, f"f32-path mismatch vs reference: {err_f32}"

    # Default fast path: bf16 MXU operands, f32 accumulation / IN stats.
    out = jax.block_until_ready(
        jax.jit(functools.partial(resnet_block_forward,
                                  matmul_dtype=jnp.bfloat16))(x, w1, b1, w2, b2))
    err_bf16 = float(jnp.max(jnp.abs(out - ref)))
    assert out.shape == x.shape
    assert err_bf16 < 5e-2, f"bf16-path mismatch vs reference: {err_bf16}"

    print("KERNEL_OK")
</pallas_src>

<mosaic_0001>
module attributes {stable_mosaic.version = 11 : i64} {
  func.func @resnet_block_kernel(%arg0: i32, %arg1: memref<1x8x256xf32, #tpu.memory_space<vmem>>, %arg2: memref<9x8x8xf32, #tpu.memory_space<vmem>>, %arg3: memref<9x8x8xf32, #tpu.memory_space<vmem>>, %arg4: memref<4x256xf32, #tpu.memory_space<vmem>>, %arg5: memref<1x8x256xf32, #tpu.memory_space<vmem>>) attributes {dimension_semantics = [#tpu.dimension_semantics<parallel>], iteration_bounds = array<i64: 2>, scalar_prefetch = 0 : i64, scratch_operands = 0 : i64, tpu.core_type = #tpu.core_type<tc>, window_params = [{transform_indices = @transform_0, window_bounds = array<i64: 1, 8, 256>}, {pipeline_mode = #tpu.pipeline_mode<synchronous>, transform_indices = @transform_1, window_bounds = array<i64: 9, 8, 8>}, {pipeline_mode = #tpu.pipeline_mode<synchronous>, transform_indices = @transform_2, window_bounds = array<i64: 9, 8, 8>}, {pipeline_mode = #tpu.pipeline_mode<synchronous>, transform_indices = @transform_3, window_bounds = array<i64: 4, 256>}, {transform_indices = @transform_4, window_bounds = array<i64: 1, 8, 256>}]} {
    %c0 = arith.constant 0 : index
    %c0_0 = arith.constant 0 : index
    %c0_1 = arith.constant 0 : index
    %0 = vector.load %arg1[%c0, %c0_0, %c0_1] : memref<1x8x256xf32, #tpu.memory_space<vmem>>, vector<1x8x256xf32>
    %1 = vector.shape_cast %0 : vector<1x8x256xf32> to vector<8x256xf32>
    %c0_2 = arith.constant 0 : index
    %c0_3 = arith.constant 0 : index
    %2 = vector.load %arg4[%c0_2, %c0_3] : memref<4x256xf32, #tpu.memory_space<vmem>>, vector<4x256xf32>
    %3 = vector.extract_strided_slice %2 {offsets = [0, 0], sizes = [1, 256], strides = [1, 1]} : vector<4x256xf32> to vector<1x256xf32>
    %cst = arith.constant 5.000000e-01 : f32
    %4 = vector.broadcast %cst : f32 to vector<1x256xf32>
    %5 = arith.cmpf ogt, %3, %4 : vector<1x256xf32>
    %6 = vector.extract_strided_slice %2 {offsets = [1, 0], sizes = [1, 256], strides = [1, 1]} : vector<4x256xf32> to vector<1x256xf32>
    %cst_4 = arith.constant 5.000000e-01 : f32
    %7 = vector.broadcast %cst_4 : f32 to vector<1x256xf32>
    %8 = arith.cmpf ogt, %6, %7 : vector<1x256xf32>
    %9 = vector.extract_strided_slice %2 {offsets = [2, 0], sizes = [1, 256], strides = [1, 1]} : vector<4x256xf32> to vector<1x256xf32>
    %cst_5 = arith.constant 5.000000e-01 : f32
    %10 = vector.broadcast %cst_5 : f32 to vector<1x256xf32>
    %11 = arith.cmpf ogt, %9, %10 : vector<1x256xf32>
    %12 = vector.extract_strided_slice %2 {offsets = [3, 0], sizes = [1, 256], strides = [1, 1]} : vector<4x256xf32> to vector<1x256xf32>
    %cst_6 = arith.constant 5.000000e-01 : f32
    %13 = vector.broadcast %cst_6 : f32 to vector<1x256xf32>
    %14 = arith.cmpf ogt, %12, %13 : vector<1x256xf32>
    %cst_7 = arith.constant 0.000000e+00 : f32
    %15 = vector.broadcast %cst_7 : f32 to vector<8x256xf32>
    %c1_i32 = arith.constant 1 : i32
    %16 = tpu.dynamic_rotate %1 by %c1_i32 dim 1 : vector<8x256xf32>, i32 -> vector<8x256xf32>
    %c255_i32 = arith.constant 255 : i32
    %17 = tpu.dynamic_rotate %1 by %c255_i32 dim 1 : vector<8x256xf32>, i32 -> vector<8x256xf32>
    %18 = vector.shape_cast %11 : vector<1x256xi1> to vector<1x256xi1>
    %19 = vector.broadcast %18 : vector<1x256xi1> to vector<8x256xi1>
    %20 = arith.select %19, %17, %16 : vector<8x256xi1>, vector<8x256xf32>
    %c16_i32 = arith.constant 16 : i32
    %21 = tpu.dynamic_rotate %20 by %c16_i32 dim 1 : vector<8x256xf32>, i32 -> vector<8x256xf32>
    %c240_i32 = arith.constant 240 : i32
    %22 = tpu.dynamic_rotate %20 by %c240_i32 dim 1 : vector<8x256xf32>, i32 -> vector<8x256xf32>
    %23 = vector.shape_cast %5 : vector<1x256xi1> to vector<1x256xi1>
    %24 = vector.broadcast %23 : vector<1x256xi1> to vector<8x256xi1>
    %25 = arith.select %24, %22, %21 : vector<8x256xi1>, vector<8x256xf32>
    %c0_8 = arith.constant 0 : index
    %c0_9 = arith.constant 0 : index
    %c0_10 = arith.constant 0 : index
    %26 = vector.load %arg2[%c0_8, %c0_9, %c0_10] : memref<9x8x8xf32, #tpu.memory_space<vmem>>, vector<1x8x8xf32>
    %27 = vector.shape_cast %26 : vector<1x8x8xf32> to vector<8x8xf32>
    %cst_11 = arith.constant dense<0.000000e+00> : vector<8x256xf32>
    %28 = tpu.matmul %27, %25, %cst_11 {dimension_numbers = #tpu.dot_dimension_numbers<[1], [0], [0], [1], [0, 0, 1, 1], [], []>} : vector<8x8xf32>, vector<8x256xf32>, vector<8x256xf32> -> vector<8x256xf32>
    %29 = arith.addf %15, %28 : vector<8x256xf32>
    %c3 = arith.constant 3 : index
    %c0_12 = arith.constant 0 : index
    %c0_13 = arith.constant 0 : index
    %30 = vector.load %arg2[%c3, %c0_12, %c0_13] : memref<9x8x8xf32, #tpu.memory_space<vmem>>, vector<1x8x8xf32>
    %31 = vector.shape_cast %30 : vector<1x8x8xf32> to vector<8x8xf32>
    %cst_14 = arith.constant dense<0.000000e+00> : vector<8x256xf32>
    %32 = tpu.matmul %31, %20, %cst_14 {dimension_numbers = #tpu.dot_dimension_numbers<[1], [0], [0], [1], [0, 0, 1, 1], [], []>} : vector<8x8xf32>, vector<8x256xf32>, vector<8x256xf32> -> vector<8x256xf32>
    %33 = arith.addf %29, %32 : vector<8x256xf32>
    %c240_i32_15 = arith.constant 240 : i32
    %34 = tpu.dynamic_rotate %20 by %c240_i32_15 dim 1 : vector<8x256xf32>, i32 -> vector<8x256xf32>
    %c16_i32_16 = arith.constant 16 : i32
    %35 = tpu.dynamic_rotate %20 by %c16_i32_16 dim 1 : vector<8x256xf32>, i32 -> vector<8x256xf32>
    %36 = vector.shape_cast %8 : vector<1x256xi1> to vector<1x256xi1>
    %37 = vector.broadcast %36 : vector<1x256xi1> to vector<8x256xi1>
    %38 = arith.select %37, %35, %34 : vector<8x256xi1>, vector<8x256xf32>
    %c6 = arith.constant 6 : index
    %c0_17 = arith.constant 0 : index
    %c0_18 = arith.constant 0 : index
    %39 = vector.load %arg2[%c6, %c0_17, %c0_18] : memref<9x8x8xf32, #tpu.memory_space<vmem>>, vector<1x8x8xf32>
    %40 = vector.shape_cast %39 : vector<1x8x8xf32> to vector<8x8xf32>
    %cst_19 = arith.constant dense<0.000000e+00> : vector<8x256xf32>
    %41 = tpu.matmul %40, %38, %cst_19 {dimension_numbers = #tpu.dot_dimension_numbers<[1], [0], [0], [1], [0, 0, 1, 1], [], []>} : vector<8x8xf32>, vector<8x256xf32>, vector<8x256xf32> -> vector<8x256xf32>
    %42 = arith.addf %33, %41 : vector<8x256xf32>
    %c16_i32_20 = arith.constant 16 : i32
    %43 = tpu.dynamic_rotate %1 by %c16_i32_20 dim 1 : vector<8x256xf32>, i32 -> vector<8x256xf32>
    %c240_i32_21 = arith.constant 240 : i32
    %44 = tpu.dynamic_rotate %1 by %c240_i32_21 dim 1 : vector<8x256xf32>, i32 -> vector<8x256xf32>
    %45 = vector.shape_cast %5 : vector<1x256xi1> to vector<1x256xi1>
    %46 = vector.broadcast %45 : vector<1x256xi1> to vector<8x256xi1>
    %47 = arith.select %46, %44, %43 : vector<8x256xi1>, vector<8x256xf32>
    %c1 = arith.constant 1 : index
    %c0_22 = arith.constant 0 : index
    %c0_23 = arith.constant 0 : index
    %48 = vector.load %arg2[%c1, %c0_22, %c0_23] : memref<9x8x8xf32, #tpu.memory_space<vmem>>, vector<1x8x8xf32>
    %49 = vector.shape_cast %48 : vector<1x8x8xf32> to vector<8x8xf32>
    %cst_24 = arith.constant dense<0.000000e+00> : vector<8x256xf32>
    %50 = tpu.matmul %49, %47, %cst_24 {dimension_numbers = #tpu.dot_dimension_numbers<[1], [0], [0], [1], [0, 0, 1, 1], [], []>} : vector<8x8xf32>, vector<8x256xf32>, vector<8x256xf32> -> vector<8x256xf32>
    %51 = arith.addf %42, %50 : vector<8x256xf32>
    %c4 = arith.constant 4 : index
    %c0_25 = arith.constant 0 : index
    %c0_26 = arith.constant 0 : index
    %52 = vector.load %arg2[%c4, %c0_25, %c0_26] : memref<9x8x8xf32, #tpu.memory_space<vmem>>, vector<1x8x8xf32>
    %53 = vector.shape_cast %52 : vector<1x8x8xf32> to vector<8x8xf32>
    %cst_27 = arith.constant dense<0.000000e+00> : vector<8x256xf32>
    %54 = tpu.matmul %53, %1, %cst_27 {dimension_numbers = #tpu.dot_dimension_numbers<[1], [0], [0], [1], [0, 0, 1, 1], [], []>} : vector<8x8xf32>, vector<8x256xf32>, vector<8x256xf32> -> vector<8x256xf32>
    %55 = arith.addf %51, %54 : vector<8x256xf32>
    %c240_i32_28 = arith.constant 240 : i32
    %56 = tpu.dynamic_rotate %1 by %c240_i32_28 dim 1 : vector<8x256xf32>, i32 -> vector<8x256xf32>
    %c16_i32_29 = arith.constant 16 : i32
    %57 = tpu.dynamic_rotate %1 by %c16_i32_29 dim 1 : vector<8x256xf32>, i32 -> vector<8x256xf32>
    %58 = vector.shape_cast %8 : vector<1x256xi1> to vector<1x256xi1>
    %59 = vector.broadcast %58 : vector<1x256xi1> to vector<8x256xi1>
    %60 = arith.select %59, %57, %56 : vector<8x256xi1>, vector<8x256xf32>
    %c7 = arith.constant 7 : index
    %c0_30 = arith.constant 0 : index
    %c0_31 = arith.constant 0 : index
    %61 = vector.load %arg2[%c7, %c0_30, %c0_31] : memref<9x8x8xf32, #tpu.memory_space<vmem>>, vector<1x8x8xf32>
    %62 = vector.shape_cast %61 : vector<1x8x8xf32> to vector<8x8xf32>
    %cst_32 = arith.constant dense<0.000000e+00> : vector<8x256xf32>
    %63 = tpu.matmul %62, %60, %cst_32 {dimension_numbers = #tpu.dot_dimension_numbers<[1], [0], [0], [1], [0, 0, 1, 1], [], []>} : vector<8x8xf32>, vector<8x256xf32>, vector<8x256xf32> -> vector<8x256xf32>
    %64 = arith.addf %55, %63 : vector<8x256xf32>
    %c255_i32_33 = arith.constant 255 : i32
    %65 = tpu.dynamic_rotate %1 by %c255_i32_33 dim 1 : vector<8x256xf32>, i32 -> vector<8x256xf32>
    %c1_i32_34 = arith.constant 1 : i32
    %66 = tpu.dynamic_rotate %1 by %c1_i32_34 dim 1 : vector<8x256xf32>, i32 -> vector<8x256xf32>
    %67 = vector.shape_cast %14 : vector<1x256xi1> to vector<1x256xi1>
    %68 = vector.broadcast %67 : vector<1x256xi1> to vector<8x256xi1>
    %69 = arith.select %68, %66, %65 : vector<8x256xi1>, vector<8x256xf32>
    %c16_i32_35 = arith.constant 16 : i32
    %70 = tpu.dynamic_rotate %69 by %c16_i32_35 dim 1 : vector<8x256xf32>, i32 -> vector<8x256xf32>
    %c240_i32_36 = arith.constant 240 : i32
    %71 = tpu.dynamic_rotate %69 by %c240_i32_36 dim 1 : vector<8x256xf32>, i32 -> vector<8x256xf32>
    %72 = vector.shape_cast %5 : vector<1x256xi1> to vector<1x256xi1>
    %73 = vector.broadcast %72 : vector<1x256xi1> to vector<8x256xi1>
    %74 = arith.select %73, %71, %70 : vector<8x256xi1>, vector<8x256xf32>
    %c2 = arith.constant 2 : index
    %c0_37 = arith.constant 0 : index
    %c0_38 = arith.constant 0 : index
    %75 = vector.load %arg2[%c2, %c0_37, %c0_38] : memref<9x8x8xf32, #tpu.memory_space<vmem>>, vector<1x8x8xf32>
    %76 = vector.shape_cast %75 : vector<1x8x8xf32> to vector<8x8xf32>
    %cst_39 = arith.constant dense<0.000000e+00> : vector<8x256xf32>
    %77 = tpu.matmul %76, %74, %cst_39 {dimension_numbers = #tpu.dot_dimension_numbers<[1], [0], [0], [1], [0, 0, 1, 1], [], []>} : vector<8x8xf32>, vector<8x256xf32>, vector<8x256xf32> -> vector<8x256xf32>
    %78 = arith.addf %64, %77 : vector<8x256xf32>
    %c5 = arith.constant 5 : index
    %c0_40 = arith.constant 0 : index
    %c0_41 = arith.constant 0 : index
    %79 = vector.load %arg2[%c5, %c0_40, %c0_41] : memref<9x8x8xf32, #tpu.memory_space<vmem>>, vector<1x8x8xf32>
    %80 = vector.shape_cast %79 : vector<1x8x8xf32> to vector<8x8xf32>
    %cst_42 = arith.constant dense<0.000000e+00> : vector<8x256xf32>
    %81 = tpu.matmul %80, %69, %cst_42 {dimension_numbers = #tpu.dot_dimension_numbers<[1], [0], [0], [1], [0, 0, 1, 1], [], []>} : vector<8x8xf32>, vector<8x256xf32>, vector<8x256xf32> -> vector<8x256xf32>
    %82 = arith.addf %78, %81 : vector<8x256xf32>
    %c240_i32_43 = arith.constant 240 : i32
    %83 = tpu.dynamic_rotate %69 by %c240_i32_43 dim 1 : vector<8x256xf32>, i32 -> vector<8x256xf32>
    %c16_i32_44 = arith.constant 16 : i32
    %84 = tpu.dynamic_rotate %69 by %c16_i32_44 dim 1 : vector<8x256xf32>, i32 -> vector<8x256xf32>
    %85 = vector.shape_cast %8 : vector<1x256xi1> to vector<1x256xi1>
    %86 = vector.broadcast %85 : vector<1x256xi1> to vector<8x256xi1>
    %87 = arith.select %86, %84, %83 : vector<8x256xi1>, vector<8x256xf32>
    %c8 = arith.constant 8 : index
    %c0_45 = arith.constant 0 : index
    %c0_46 = arith.constant 0 : index
    %88 = vector.load %arg2[%c8, %c0_45, %c0_46] : memref<9x8x8xf32, #tpu.memory_space<vmem>>, vector<1x8x8xf32>
    %89 = vector.shape_cast %88 : vector<1x8x8xf32> to vector<8x8xf32>
    %cst_47 = arith.constant dense<0.000000e+00> : vector<8x256xf32>
    %90 = tpu.matmul %89, %87, %cst_47 {dimension_numbers = #tpu.dot_dimension_numbers<[1], [0], [0], [1], [0, 0, 1, 1], [], []>} : vector<8x8xf32>, vector<8x256xf32>, vector<8x256xf32> -> vector<8x256xf32>
    %91 = arith.addf %82, %90 : vector<8x256xf32>
    %cst_48 = arith.constant dense<0.000000e+00> : vector<8xf32>
    %92 = vector.multi_reduction <add>, %91, %cst_48 [1] : vector<8x256xf32> to vector<8xf32>
    %93 = vector.shape_cast %92 : vector<8xf32> to vector<8x1xf32>
    %cst_49 = arith.constant 2.560000e+02 : f32
    %94 = vector.broadcast %cst_49 : f32 to vector<8x1xf32>
    %95 = arith.divf %93, %94 : vector<8x1xf32>
    %96 = arith.mulf %91, %91 : vector<8x256xf32>
    %cst_50 = arith.constant dense<0.000000e+00> : vector<8xf32>
    %97 = vector.multi_reduction <add>, %96, %cst_50 [1] : vector<8x256xf32> to vector<8xf32>
    %98 = vector.shape_cast %97 : vector<8xf32> to vector<8x1xf32>
    %cst_51 = arith.constant 2.560000e+02 : f32
    %99 = vector.broadcast %cst_51 : f32 to vector<8x1xf32>
    %100 = arith.divf %98, %99 : vector<8x1xf32>
    %101 = arith.mulf %95, %95 : vector<8x1xf32>
    %102 = arith.subf %100, %101 : vector<8x1xf32>
    %cst_52 = arith.constant 0.000000e+00 : f32
    %103 = vector.broadcast %cst_52 : f32 to vector<8x1xf32>
    %104 = arith.maximumf %102, %103 : vector<8x1xf32>
    %105 = vector.broadcast %95 : vector<8x1xf32> to vector<8x256xf32>
    %106 = arith.subf %91, %105 : vector<8x256xf32>
    %cst_53 = arith.constant 9.99999974E-6 : f32
    %107 = vector.broadcast %cst_53 : f32 to vector<8x1xf32>
    %108 = arith.addf %104, %107 : vector<8x1xf32>
    %109 = math.rsqrt %108 : vector<8x1xf32>
    %110 = vector.broadcast %109 : vector<8x1xf32> to vector<8x256xf32>
    %111 = arith.mulf %106, %110 : vector<8x256xf32>
    %cst_54 = arith.constant 0.000000e+00 : f32
    %112 = vector.broadcast %cst_54 : f32 to vector<8x256xf32>
    %113 = arith.maximumf %111, %112 : vector<8x256xf32>
    %cst_55 = arith.constant 0.000000e+00 : f32
    %114 = vector.broadcast %cst_55 : f32 to vector<8x256xf32>
    %c1_i32_56 = arith.constant 1 : i32
    %115 = tpu.dynamic_rotate %113 by %c1_i32_56 dim 1 : vector<8x256xf32>, i32 -> vector<8x256xf32>
    %c255_i32_57 = arith.constant 255 : i32
    %116 = tpu.dynamic_rotate %113 by %c255_i32_57 dim 1 : vector<8x256xf32>, i32 -> vector<8x256xf32>
    %117 = vector.shape_cast %11 : vector<1x256xi1> to vector<1x256xi1>
    %118 = vector.broadcast %117 : vector<1x256xi1> to vector<8x256xi1>
    %119 = arith.select %118, %116, %115 : vector<8x256xi1>, vector<8x256xf32>
    %c16_i32_58 = arith.constant 16 : i32
    %120 = tpu.dynamic_rotate %119 by %c16_i32_58 dim 1 : vector<8x256xf32>, i32 -> vector<8x256xf32>
    %c240_i32_59 = arith.constant 240 : i32
    %121 = tpu.dynamic_rotate %119 by %c240_i32_59 dim 1 : vector<8x256xf32>, i32 -> vector<8x256xf32>
    %122 = vector.shape_cast %5 : vector<1x256xi1> to vector<1x256xi1>
    %123 = vector.broadcast %122 : vector<1x256xi1> to vector<8x256xi1>
    %124 = arith.select %123, %121, %120 : vector<8x256xi1>, vector<8x256xf32>
    %c0_60 = arith.constant 0 : index
    %c0_61 = arith.constant 0 : index
    %c0_62 = arith.constant 0 : index
    %125 = vector.load %arg3[%c0_60, %c0_61, %c0_62] : memref<9x8x8xf32, #tpu.memory_space<vmem>>, vector<1x8x8xf32>
    %126 = vector.shape_cast %125 : vector<1x8x8xf32> to vector<8x8xf32>
    %cst_63 = arith.constant dense<0.000000e+00> : vector<8x256xf32>
    %127 = tpu.matmul %126, %124, %cst_63 {dimension_numbers = #tpu.dot_dimension_numbers<[1], [0], [0], [1], [0, 0, 1, 1], [], []>} : vector<8x8xf32>, vector<8x256xf32>, vector<8x256xf32> -> vector<8x256xf32>
    %128 = arith.addf %114, %127 : vector<8x256xf32>
    %c3_64 = arith.constant 3 : index
    %c0_65 = arith.constant 0 : index
    %c0_66 = arith.constant 0 : index
    %129 = vector.load %arg3[%c3_64, %c0_65, %c0_66] : memref<9x8x8xf32, #tpu.memory_space<vmem>>, vector<1x8x8xf32>
    %130 = vector.shape_cast %129 : vector<1x8x8xf32> to vector<8x8xf32>
    %cst_67 = arith.constant dense<0.000000e+00> : vector<8x256xf32>
    %131 = tpu.matmul %130, %119, %cst_67 {dimension_numbers = #tpu.dot_dimension_numbers<[1], [0], [0], [1], [0, 0, 1, 1], [], []>} : vector<8x8xf32>, vector<8x256xf32>, vector<8x256xf32> -> vector<8x256xf32>
    %132 = arith.addf %128, %131 : vector<8x256xf32>
    %c240_i32_68 = arith.constant 240 : i32
    %133 = tpu.dynamic_rotate %119 by %c240_i32_68 dim 1 : vector<8x256xf32>, i32 -> vector<8x256xf32>
    %c16_i32_69 = arith.constant 16 : i32
    %134 = tpu.dynamic_rotate %119 by %c16_i32_69 dim 1 : vector<8x256xf32>, i32 -> vector<8x256xf32>
    %135 = vector.shape_cast %8 : vector<1x256xi1> to vector<1x256xi1>
    %136 = vector.broadcast %135 : vector<1x256xi1> to vector<8x256xi1>
    %137 = arith.select %136, %134, %133 : vector<8x256xi1>, vector<8x256xf32>
    %c6_70 = arith.constant 6 : index
    %c0_71 = arith.constant 0 : index
    %c0_72 = arith.constant 0 : index
    %138 = vector.load %arg3[%c6_70, %c0_71, %c0_72] : memref<9x8x8xf32, #tpu.memory_space<vmem>>, vector<1x8x8xf32>
    %139 = vector.shape_cast %138 : vector<1x8x8xf32> to vector<8x8xf32>
    %cst_73 = arith.constant dense<0.000000e+00> : vector<8x256xf32>
    %140 = tpu.matmul %139, %137, %cst_73 {dimension_numbers = #tpu.dot_dimension_numbers<[1], [0], [0], [1], [0, 0, 1, 1], [], []>} : vector<8x8xf32>, vector<8x256xf32>, vector<8x256xf32> -> vector<8x256xf32>
    %141 = arith.addf %132, %140 : vector<8x256xf32>
    %c16_i32_74 = arith.constant 16 : i32
    %142 = tpu.dynamic_rotate %113 by %c16_i32_74 dim 1 : vector<8x256xf32>, i32 -> vector<8x256xf32>
    %c240_i32_75 = arith.constant 240 : i32
    %143 = tpu.dynamic_rotate %113 by %c240_i32_75 dim 1 : vector<8x256xf32>, i32 -> vector<8x256xf32>
    %144 = vector.shape_cast %5 : vector<1x256xi1> to vector<1x256xi1>
    %145 = vector.broadcast %144 : vector<1x256xi1> to vector<8x256xi1>
    %146 = arith.select %145, %143, %142 : vector<8x256xi1>, vector<8x256xf32>
    %c1_76 = arith.constant 1 : index
    %c0_77 = arith.constant 0 : index
    %c0_78 = arith.constant 0 : index
    %147 = vector.load %arg3[%c1_76, %c0_77, %c0_78] : memref<9x8x8xf32, #tpu.memory_space<vmem>>, vector<1x8x8xf32>
    %148 = vector.shape_cast %147 : vector<1x8x8xf32> to vector<8x8xf32>
    %cst_79 = arith.constant dense<0.000000e+00> : vector<8x256xf32>
    %149 = tpu.matmul %148, %146, %cst_79 {dimension_numbers = #tpu.dot_dimension_numbers<[1], [0], [0], [1], [0, 0, 1, 1], [], []>} : vector<8x8xf32>, vector<8x256xf32>, vector<8x256xf32> -> vector<8x256xf32>
    %150 = arith.addf %141, %149 : vector<8x256xf32>
    %c4_80 = arith.constant 4 : index
    %c0_81 = arith.constant 0 : index
    %c0_82 = arith.constant 0 : index
    %151 = vector.load %arg3[%c4_80, %c0_81, %c0_82] : memref<9x8x8xf32, #tpu.memory_space<vmem>>, vector<1x8x8xf32>
    %152 = vector.shape_cast %151 : vector<1x8x8xf32> to vector<8x8xf32>
    %cst_83 = arith.constant dense<0.000000e+00> : vector<8x256xf32>
    %153 = tpu.matmul %152, %113, %cst_83 {dimension_numbers = #tpu.dot_dimension_numbers<[1], [0], [0], [1], [0, 0, 1, 1], [], []>} : vector<8x8xf32>, vector<8x256xf32>, vector<8x256xf32> -> vector<8x256xf32>
    %154 = arith.addf %150, %153 : vector<8x256xf32>
    %c240_i32_84 = arith.constant 240 : i32
    %155 = tpu.dynamic_rotate %113 by %c240_i32_84 dim 1 : vector<8x256xf32>, i32 -> vector<8x256xf32>
    %c16_i32_85 = arith.constant 16 : i32
    %156 = tpu.dynamic_rotate %113 by %c16_i32_85 dim 1 : vector<8x256xf32>, i32 -> vector<8x256xf32>
    %157 = vector.shape_cast %8 : vector<1x256xi1> to vector<1x256xi1>
    %158 = vector.broadcast %157 : vector<1x256xi1> to vector<8x256xi1>
    %159 = arith.select %158, %156, %155 : vector<8x256xi1>, vector<8x256xf32>
    %c7_86 = arith.constant 7 : index
    %c0_87 = arith.constant 0 : index
    %c0_88 = arith.constant 0 : index
    %160 = vector.load %arg3[%c7_86, %c0_87, %c0_88] : memref<9x8x8xf32, #tpu.memory_space<vmem>>, vector<1x8x8xf32>
    %161 = vector.shape_cast %160 : vector<1x8x8xf32> to vector<8x8xf32>
    %cst_89 = arith.constant dense<0.000000e+00> : vector<8x256xf32>
    %162 = tpu.matmul %161, %159, %cst_89 {dimension_numbers = #tpu.dot_dimension_numbers<[1], [0], [0], [1], [0, 0, 1, 1], [], []>} : vector<8x8xf32>, vector<8x256xf32>, vector<8x256xf32> -> vector<8x256xf32>
    %163 = arith.addf %154, %162 : vector<8x256xf32>
    %c255_i32_90 = arith.constant 255 : i32
    %164 = tpu.dynamic_rotate %113 by %c255_i32_90 dim 1 : vector<8x256xf32>, i32 -> vector<8x256xf32>
    %c1_i32_91 = arith.constant 1 : i32
    %165 = tpu.dynamic_rotate %113 by %c1_i32_91 dim 1 : vector<8x256xf32>, i32 -> vector<8x256xf32>
    %166 = vector.shape_cast %14 : vector<1x256xi1> to vector<1x256xi1>
    %167 = vector.broadcast %166 : vector<1x256xi1> to vector<8x256xi1>
    %168 = arith.select %167, %165, %164 : vector<8x256xi1>, vector<8x256xf32>
    %c16_i32_92 = arith.constant 16 : i32
    %169 = tpu.dynamic_rotate %168 by %c16_i32_92 dim 1 : vector<8x256xf32>, i32 -> vector<8x256xf32>
    %c240_i32_93 = arith.constant 240 : i32
    %170 = tpu.dynamic_rotate %168 by %c240_i32_93 dim 1 : vector<8x256xf32>, i32 -> vector<8x256xf32>
    %171 = vector.shape_cast %5 : vector<1x256xi1> to vector<1x256xi1>
    %172 = vector.broadcast %171 : vector<1x256xi1> to vector<8x256xi1>
    %173 = arith.select %172, %170, %169 : vector<8x256xi1>, vector<8x256xf32>
    %c2_94 = arith.constant 2 : index
    %c0_95 = arith.constant 0 : index
    %c0_96 = arith.constant 0 : index
    %174 = vector.load %arg3[%c2_94, %c0_95, %c0_96] : memref<9x8x8xf32, #tpu.memory_space<vmem>>, vector<1x8x8xf32>
    %175 = vector.shape_cast %174 : vector<1x8x8xf32> to vector<8x8xf32>
    %cst_97 = arith.constant dense<0.000000e+00> : vector<8x256xf32>
    %176 = tpu.matmul %175, %173, %cst_97 {dimension_numbers = #tpu.dot_dimension_numbers<[1], [0], [0], [1], [0, 0, 1, 1], [], []>} : vector<8x8xf32>, vector<8x256xf32>, vector<8x256xf32> -> vector<8x256xf32>
    %177 = arith.addf %163, %176 : vector<8x256xf32>
    %c5_98 = arith.constant 5 : index
    %c0_99 = arith.constant 0 : index
    %c0_100 = arith.constant 0 : index
    %178 = vector.load %arg3[%c5_98, %c0_99, %c0_100] : memref<9x8x8xf32, #tpu.memory_space<vmem>>, vector<1x8x8xf32>
    %179 = vector.shape_cast %178 : vector<1x8x8xf32> to vector<8x8xf32>
    %cst_101 = arith.constant dense<0.000000e+00> : vector<8x256xf32>
    %180 = tpu.matmul %179, %168, %cst_101 {dimension_numbers = #tpu.dot_dimension_numbers<[1], [0], [0], [1], [0, 0, 1, 1], [], []>} : vector<8x8xf32>, vector<8x256xf32>, vector<8x256xf32> -> vector<8x256xf32>
    %181 = arith.addf %177, %180 : vector<8x256xf32>
    %c240_i32_102 = arith.constant 240 : i32
    %182 = tpu.dynamic_rotate %168 by %c240_i32_102 dim 1 : vector<8x256xf32>, i32 -> vector<8x256xf32>
    %c16_i32_103 = arith.constant 16 : i32
    %183 = tpu.dynamic_rotate %168 by %c16_i32_103 dim 1 : vector<8x256xf32>, i32 -> vector<8x256xf32>
    %184 = vector.shape_cast %8 : vector<1x256xi1> to vector<1x256xi1>
    %185 = vector.broadcast %184 : vector<1x256xi1> to vector<8x256xi1>
    %186 = arith.select %185, %183, %182 : vector<8x256xi1>, vector<8x256xf32>
    %c8_104 = arith.constant 8 : index
    %c0_105 = arith.constant 0 : index
    %c0_106 = arith.constant 0 : index
    %187 = vector.load %arg3[%c8_104, %c0_105, %c0_106] : memref<9x8x8xf32, #tpu.memory_space<vmem>>, vector<1x8x8xf32>
    %188 = vector.shape_cast %187 : vector<1x8x8xf32> to vector<8x8xf32>
    %cst_107 = arith.constant dense<0.000000e+00> : vector<8x256xf32>
    %189 = tpu.matmul %188, %186, %cst_107 {dimension_numbers = #tpu.dot_dimension_numbers<[1], [0], [0], [1], [0, 0, 1, 1], [], []>} : vector<8x8xf32>, vector<8x256xf32>, vector<8x256xf32> -> vector<8x256xf32>
    %190 = arith.addf %181, %189 : vector<8x256xf32>
    %cst_108 = arith.constant dense<0.000000e+00> : vector<8xf32>
    %191 = vector.multi_reduction <add>, %190, %cst_108 [1] : vector<8x256xf32> to vector<8xf32>
    %192 = vector.shape_cast %191 : vector<8xf32> to vector<8x1xf32>
    %cst_109 = arith.constant 2.560000e+02 : f32
    %193 = vector.broadcast %cst_109 : f32 to vector<8x1xf32>
    %194 = arith.divf %192, %193 : vector<8x1xf32>
    %195 = arith.mulf %190, %190 : vector<8x256xf32>
    %cst_110 = arith.constant dense<0.000000e+00> : vector<8xf32>
    %196 = vector.multi_reduction <add>, %195, %cst_110 [1] : vector<8x256xf32> to vector<8xf32>
    %197 = vector.shape_cast %196 : vector<8xf32> to vector<8x1xf32>
    %cst_111 = arith.constant 2.560000e+02 : f32
    %198 = vector.broadcast %cst_111 : f32 to vector<8x1xf32>
    %199 = arith.divf %197, %198 : vector<8x1xf32>
    %200 = arith.mulf %194, %194 : vector<8x1xf32>
    %201 = arith.subf %199, %200 : vector<8x1xf32>
    %cst_112 = arith.constant 0.000000e+00 : f32
    %202 = vector.broadcast %cst_112 : f32 to vector<8x1xf32>
    %203 = arith.maximumf %201, %202 : vector<8x1xf32>
    %204 = vector.broadcast %194 : vector<8x1xf32> to vector<8x256xf32>
    %205 = arith.subf %190, %204 : vector<8x256xf32>
    %cst_113 = arith.constant 9.99999974E-6 : f32
    %206 = vector.broadcast %cst_113 : f32 to vector<8x1xf32>
    %207 = arith.addf %203, %206 : vector<8x1xf32>
    %208 = math.rsqrt %207 : vector<8x1xf32>
    %209 = vector.broadcast %208 : vector<8x1xf32> to vector<8x256xf32>
    %210 = arith.mulf %205, %209 : vector<8x256xf32>
    %211 = arith.addf %1, %210 : vector<8x256xf32>
    %c0_114 = arith.constant 0 : index
    %c0_115 = arith.constant 0 : index
    %c0_116 = arith.constant 0 : index
    %212 = vector.load %arg5[%c0_114, %c0_115, %c0_116] : memref<1x8x256xf32, #tpu.memory_space<vmem>>, vector<1x8x256xf32>
    %213 = vector.shape_cast %212 : vector<1x8x256xf32> to vector<8x256xf32>
    %214 = vector.shape_cast %211 : vector<8x256xf32> to vector<1x8x256xf32>
    tpu.vector_store %arg5[%c0_114, %c0_115, %c0_116], %214 {strides = array<i32>} : memref<1x8x256xf32, #tpu.memory_space<vmem>>, vector<1x8x256xf32>,
    return
  }
  func.func @transform_0(%arg0: i32) -> (i32, i32, i32) {
    %c0_i32 = arith.constant 0 : i32
    %c0_i32_0 = arith.constant 0 : i32
    %c0_i32_1 = arith.constant 0 : i32
    return %arg0, %c0_i32, %c0_i32_0 : i32, i32, i32
  }
  func.func @transform_1(%arg0: i32) -> (i32, i32, i32) {
    %c0_i32 = arith.constant 0 : i32
    %c0_i32_0 = arith.constant 0 : i32
    %c0_i32_1 = arith.constant 0 : i32
    %c0_i32_2 = arith.constant 0 : i32
    return %c0_i32, %c0_i32_0, %c0_i32_1 : i32, i32, i32
  }
  func.func @transform_2(%arg0: i32) -> (i32, i32, i32) {
    %c0_i32 = arith.constant 0 : i32
    %c0_i32_0 = arith.constant 0 : i32
    %c0_i32_1 = arith.constant 0 : i32
    %c0_i32_2 = arith.constant 0 : i32
    return %c0_i32, %c0_i32_0, %c0_i32_1 : i32, i32, i32
  }
  func.func @transform_3(%arg0: i32) -> (i32, i32) {
    %c0_i32 = arith.constant 0 : i32
    %c0_i32_0 = arith.constant 0 : i32
    %c0_i32_1 = arith.constant 0 : i32
    return %c0_i32, %c0_i32_0 : i32, i32
  }
  func.func @transform_4(%arg0: i32) -> (i32, i32, i32) {
    %c0_i32 = arith.constant 0 : i32
    %c0_i32_0 = arith.constant 0 : i32
    %c0_i32_1 = arith.constant 0 : i32
    return %arg0, %c0_i32, %c0_i32_0 : i32, i32, i32
  }
}

</mosaic_0001>

<llo_original>
// kernel: resnet_block_forward.1
$region0: #{resnet_block_forward.1}
  #allocation0 [shape = 'u32[]', space=smem, size = 0x4, offset = 0x4, fixed_abs, tag = 'smem constant byte address 0x4 - core index']
  #allocation1 [shape = 'u32[72,128]{1,0:T(1,128)}', space=vmem, size = 0x9000, scoped, tag = 'internal scratch']
  %s0 = inlined_call_operand.vmem [shape: f32[2,8,256], index: 0, kind: input, shape index: {}]
  %s1 = inlined_call_operand.vmem [shape: f32[9,8,8], index: 1, kind: input, shape index: {}]
  %s2 = inlined_call_operand.vmem [shape: f32[9,8,8], index: 2, kind: input, shape index: {}]
  %s3 = inlined_call_operand.vmem [shape: f32[4,256], index: 3, kind: input, shape index: {}]
  %s4 = inlined_call_operand.vmem [shape: f32[2,8,256], index: 4, kind: output, shape index: {}]
  %s5 = sld [smem:[#allocation0]]
  $region49: #{resnet_block_forward.1} parent=0
    _
  %s7 = ssub.s32 1, %s5
  %s8 = scalar_select 0, %s7, %s5
  loop: start=0, step=1, limit=4
  $region2: #{resnet_block_forward.1} parent=0 // loop_pre_header
    _
  $region3: #{resnet_block_forward.1} parent=0 // loop_header
    %s10 = sphi 0, %s14
    %p11 = scmp.ge.s32.totalorder %s10, 4
    %s20 = sphi 0, %s22
    %s23 = sphi 0, %s20
    %s24 = sphi 0, %s23
    %s40 = sphi 0, %s24
    %s44 = sphi 0, %s44
    %s46 = sphi 0, %s44
    %s47 = sphi 0, %s46
    %s61 = sphi 0, %s47
    %s65 = sphi 0, %s65
    %s67 = sphi 0, %s65
    %s68 = sphi 0, %s67
    %s82 = sphi 0, %s68
    %s86 = sphi 0, %s86
    %s88 = sphi 0, %s86
    %s89 = sphi 0, %s88
    %s103 = sphi 0, %s89
    %s109 = sphi 0, %s111
    %s112 = sphi 0, %s109
    %s113 = sphi 0, %s112
    %s129 = sphi 0, %s113
  $region4: #{resnet_block_forward.1} parent=0 // loop_header_branch
    %13 = sbr.rel (%p11) target = $region8
  $region5: #{resnet_block_forward.1} parent=0 // loop_body
    %s15 = ssub.s32 %s10, 1
    %s16 = ssub.s32 %s10, 2
    %s17 = sadd.s32 %s10, 1
    %s18 = ssub.s32 %s10, %s17
    %p19 = scmp.eq.s32.totalorder %s18, 0
    %s21 = sadd.s32 %s20, 1
    %s22 = scalar_select %p19, %s20, %s21
    %p25 = pneg %p19
    %p26 = scmp.eq.s32.totalorder %s10, 1
    %p27 = por %p25, %p26
    %p28 = scmp.ne.s32.totalorder %s20, %s23
    %p29 = scmp.eq.s32.totalorder %s10, 0
    %p30 = por %p28, %p29
    %p31 = scmp.ne.s32.totalorder %s20, %s23
    %p32 = scmp.eq.s32.totalorder %s15, 1
    %p33 = por %p31, %p32
    %p34 = scmp.ne.s32.totalorder %s23, %s24
    %p35 = scmp.eq.s32.totalorder %s15, 0
    %p36 = por %p34, %p35
    %p37 = scmp.ne.s32.totalorder %s23, %s24
    %p38 = scmp.eq.s32.totalorder %s16, 1
    %p39 = por %p37, %p38
    %p41 = scmp.ne.s32.totalorder %s24, %s40
    %p42 = scmp.eq.s32.totalorder %s16, 0
    %p43 = por %p41, %p42
    %s45 = sadd.s32 %s44, 1
    %p48 = scmp.eq.s32.totalorder %s10, 1
    %p49 = scmp.ne.s32.totalorder %s44, %s46
    %p50 = scmp.eq.s32.totalorder %s10, 0
    %p51 = por %p49, %p50
    %p52 = scmp.ne.s32.totalorder %s44, %s46
    %p53 = scmp.eq.s32.totalorder %s15, 1
    %p54 = por %p52, %p53
    %p55 = scmp.ne.s32.totalorder %s46, %s47
    %p56 = scmp.eq.s32.totalorder %s15, 0
    %p57 = por %p55, %p56
    %p58 = scmp.ne.s32.totalorder %s46, %s47
    %p59 = scmp.eq.s32.totalorder %s16, 1
    %p60 = por %p58, %p59
    %p62 = scmp.ne.s32.totalorder %s47, %s61
    %p63 = scmp.eq.s32.totalorder %s16, 0
    %p64 = por %p62, %p63
    %s66 = sadd.s32 %s65, 1
    %p69 = scmp.eq.s32.totalorder %s10, 1
    %p70 = scmp.ne.s32.totalorder %s65, %s67
    %p71 = scmp.eq.s32.totalorder %s10, 0
    %p72 = por %p70, %p71
    %p73 = scmp.ne.s32.totalorder %s65, %s67
    %p74 = scmp.eq.s32.totalorder %s15, 1
    %p75 = por %p73, %p74
    %p76 = scmp.ne.s32.totalorder %s67, %s68
    %p77 = scmp.eq.s32.totalorder %s15, 0
    %p78 = por %p76, %p77
    %p79 = scmp.ne.s32.totalorder %s67, %s68
    %p80 = scmp.eq.s32.totalorder %s16, 1
    %p81 = por %p79, %p80
    %p83 = scmp.ne.s32.totalorder %s68, %s82
    %p84 = scmp.eq.s32.totalorder %s16, 0
    %p85 = por %p83, %p84
    %s87 = sadd.s32 %s86, 1
    %p90 = scmp.eq.s32.totalorder %s10, 1
    %p91 = scmp.ne.s32.totalorder %s86, %s88
    %p92 = scmp.eq.s32.totalorder %s10, 0
    %p93 = por %p91, %p92
    %p94 = scmp.ne.s32.totalorder %s86, %s88
    %p95 = scmp.eq.s32.totalorder %s15, 1
    %p96 = por %p94, %p95
    %p97 = scmp.ne.s32.totalorder %s88, %s89
    %p98 = scmp.eq.s32.totalorder %s15, 0
    %p99 = por %p97, %p98
    %p100 = scmp.ne.s32.totalorder %s88, %s89
    %p101 = scmp.eq.s32.totalorder %s16, 1
    %p102 = por %p100, %p101
    %p104 = scmp.ne.s32.totalorder %s89, %s103
    %p105 = scmp.eq.s32.totalorder %s16, 0
    %p106 = por %p104, %p105
    %s107 = ssub.s32 %s10, %s17
    %p108 = scmp.eq.s32.totalorder %s107, 0
    %s110 = sadd.s32 %s109, 1
    %s111 = scalar_select %p108, %s109, %s110
    %p114 = pneg %p108
    %p115 = scmp.eq.s32.totalorder %s10, 1
    %p116 = por %p114, %p115
    %p117 = scmp.ne.s32.totalorder %s109, %s112
    %p118 = scmp.eq.s32.totalorder %s10, 0
    %p119 = por %p117, %p118
    %p120 = scmp.ne.s32.totalorder %s109, %s112
    %p121 = scmp.eq.s32.totalorder %s15, 1
    %p122 = por %p120, %p121
    %p123 = scmp.ne.s32.totalorder %s112, %s113
    %p124 = scmp.eq.s32.totalorder %s15, 0
    %p125 = por %p123, %p124
    %p126 = scmp.ne.s32.totalorder %s112, %s113
    %p127 = scmp.eq.s32.totalorder %s16, 1
    %p128 = por %p126, %p127
    %p130 = scmp.ne.s32.totalorder %s113, %s129
    %p131 = scmp.eq.s32.totalorder %s16, 0
    %p132 = por %p130, %p131
    %p133 = scmp.le.s32.totalorder 1, %s10
    %p134 = scmp.lt.s32.totalorder %s10, 3
    %p135 = pnand %p133, %p134
    %p136 = pneg %p135
    // Predicated region
    $region9: #{resnet_block_forward.1} parent=5 // pred_check
      _
    $region10: #{resnet_block_forward.1} parent=5 // pred_check_branch
      %138 = sbr.rel (%p135) target = $region12
    $region11: #{resnet_block_forward.1} parent=5 // pred_region
      %s139 = ssub.s32 %s10, 1
      // Predicated region
      $region13: #{resnet_block_forward.1} parent=11 // pred_check
        %p140 = pneg %p57
      $region14: #{resnet_block_forward.1} parent=11 // pred_check_branch
        %142 = sbr.rel (%p140) target = $region16
      $region15: #{resnet_block_forward.1} parent=11 // pred_region
        _
      $region16: #{resnet_block_forward.1} parent=11 // pred_fallthru
        _
      // Predicated region
      $region17: #{resnet_block_forward.1} parent=11 // pred_check
        %p143 = pneg %p78
      $region18: #{resnet_block_forward.1} parent=11 // pred_check_branch
        %145 = sbr.rel (%p143) target = $region20
      $region19: #{resnet_block_forward.1} parent=11 // pred_region
        _
      $region20: #{resnet_block_forward.1} parent=11 // pred_fallthru
        _
      // Predicated region
      $region21: #{resnet_block_forward.1} parent=11 // pred_check
        %p146 = pneg %p99
      $region22: #{resnet_block_forward.1} parent=11 // pred_check_branch
        %148 = sbr.rel (%p146) target = $region24
      $region23: #{resnet_block_forward.1} parent=11 // pred_region
        _
      $region24: #{resnet_block_forward.1} parent=11 // pred_fallthru
        _
    $region12: #{resnet_block_forward.1} parent=5 // pred_fallthru
      _
    %p149 = scmp.lt.s32.totalorder %s10, 2
    // Predicated region
    $region25: #{resnet_block_forward.1} parent=5 // pred_check
      %p150 = pneg %p149
    $region26: #{resnet_block_forward.1} parent=5 // pred_check_branch
      %152 = sbr.rel (%p150) target = $region28
    $region27: #{resnet_block_forward.1} parent=5 // pred_region
      // Predicated region
      $region29: #{resnet_block_forward.1} parent=27 // pred_check
        %p153 = pneg %p30
      $region30: #{resnet_block_forward.1} parent=27 // pred_check_branch
        %155 = sbr.rel (%p153) target = $region32
      $region31: #{resnet_block_forward.1} parent=27 // pred_region
        %p156 = scmp.lt.s32.totalorder %s10, 1
        %s157 = scalar_select %p156, %s10, 1
        %s158 = smul.addr %s157, 2
        %s159 = smul.addr %s158, 8
        %s160 = scalar_lea.vmem %s0, %s159
      $region32: #{resnet_block_forward.1} parent=27 // pred_fallthru
        _
    $region28: #{resnet_block_forward.1} parent=5 // pred_fallthru
      _
    %p161 = scmp.le.s32.totalorder 1, %s10
    %p162 = scmp.lt.s32.totalorder %s10, 3
    %p163 = pnand %p161, %p162
    %p164 = pneg %p163
    // Predicated region
    $region33: #{resnet_block_forward.1} parent=5 // pred_check
      _
    $region34: #{resnet_block_forward.1} parent=5 // pred_check_branch
      %166 = sbr.rel (%p163) target = $region36
    $region35: #{resnet_block_forward.1} parent=5 // pred_region
      %s167 = ssub.s32 %s10, 1
      %p168 = scmp.lt.s32.totalorder %s15, 1
      %s169 = scalar_select %p168, %s15, 1
      %s170 = smul.addr %s169, 2
      %s171 = smul.addr %s170, 8
      %s172 = scalar_lea.vmem %s0, %s171
      %p173 = pneg %p36
      %p174 = pneg %p33
      %p175 = pneg %p57
      %p176 = pneg %p54
      %p177 = pneg %p78
      %p178 = pneg %p75
      %p179 = pneg %p99
      %p180 = pneg %p96
      %p181 = pneg %p125
      %p182 = pneg %p122
      %p183 = scmp.lt.s32.totalorder %s15, 1
      %s184 = scalar_select %p183, %s15, 1
      %s185 = smul.addr %s184, 2
      %s186 = smul.addr %s185, 8
      %s187 = scalar_lea.vmem %s4, %s186
      %p188 = scmp.lt.s32.totalorder %s15, 1
      %s189 = scalar_select %p188, %s15, 1
      %s190 = smul.addr %s189, 2
      %s191 = smul.addr %s190, 8
      %s192 = scalar_lea.vmem %s0, %s191
      %p193 = scmp.lt.s32.totalorder %s15, 1
      %s194 = scalar_select %p193, %s15, 1
      %s195 = smul.addr %s194, 2
      %s196 = smul.addr %s195, 8
      %s197 = scalar_lea.vmem %s4, %s196
      %v198 = vld [vmem:[%s192] sm:$0xff]
      %v199 = vld [vmem:[%s192 + $0x8] sm:$0xff]
      %v200 = vld [vmem:[%s3] sm:$0xff]
      %vm201 = vcmp.gt.f32.partialorder %v200, 0.5
      %202 = vrot.lane.b32.xlu0 %v198, 1
      %v203 = vpop.permute.xlu0 %202
      %204 = vrot.lane.b32.xlu0 %v199, 1
      %v205 = vpop.permute.xlu0 %204
      %v206 = vlaneseq
      %v207 = vand.u32 %v206, 127
      %vm208 = vcmp.lt.s32.totalorder %v207, 1
      %v209 = vsel %vm208, %v203, %v205
      %v210 = vsel %vm208, %v205, %v203
      %211 = vrot.lane.b32.xlu0 %v198, 127
      %v212 = vpop.permute.xlu0 %211
      %213 = vrot.lane.b32.xlu0 %v199, 127
      %v214 = vpop.permute.xlu0 %213
      %vm215 = vcmp.lt.s32.totalorder %v207, 127
      %v216 = vsel %vm215, %v212, %v214
      %v217 = vsel %vm215, %v214, %v212
      %v218 = vsel %vm201, 1, 0
      %v219 = vperm.slane %v218, 2
      %v220 = vperm.slane %v218, 6
      %v221 = vperm.slane %v219, 2
      %v222 = vperm.slane %v220, 2
      %vm223 = vcmp.eq.s32.totalorder %v221, 1
      %vm224 = vcmp.eq.s32.totalorder %v222, 1
      %v225 = vsel %vm223, %v216, %v210
      %v226 = vsel %vm224, %v217, %v209
      %227 = vrot.lane.b32.xlu0 %v225, 16
      %v228 = vpop.permute.xlu0 %227
      %229 = vrot.lane.b32.xlu0 %v226, 16
      %v230 = vpop.permute.xlu0 %229
      %vm231 = vcmp.lt.s32.totalorder %v207, 16
      %v232 = vsel %vm231, %v228, %v230
      %v233 = vsel %vm231, %v230, %v228
      %234 = vrot.lane.b32.xlu0 %v225, 112
      %v235 = vpop.permute.xlu0 %234
      %236 = vrot.lane.b32.xlu0 %v226, 112
      %v237 = vpop.permute.xlu0 %236
      %vm238 = vcmp.lt.s32.totalorder %v207, 112
      %v239 = vsel %vm238, %v235, %v237
      %v240 = vsel %vm238, %v237, %v235
      %v241 = vperm.slane %v218, 0
      %v242 = vperm.slane %v218, 4
      %v243 = vperm.slane %v241, 0
      %v244 = vperm.slane %v242, 0
      %vm245 = vcmp.eq.s32.totalorder %v243, 1
      %vm246 = vcmp.eq.s32.totalorder %v244, 1
      %v247 = vsel %vm245, %v239, %v233
      %v248 = vsel %vm246, %v240, %v232
      %v249 = vld [vmem:[%s1] sm:$0xff]
      %s250 = scalar_lea.vmem %s1, 24
      %v251 = vld [vmem:[%s250] sm:$0xff]
      %vm252 = vcmask 64512
      %v254 = vsel %vm252, %v251, 0
      %256 = vmatpush.msra.mxu0 0.0
      %257 = vmatpush.msra.mxu0 0.0
      %258 = vmatpush.msra.mxu0 0.0
      %259 = vmatpush.msra.mxu0 0.0
      %260 = vmatpush.msra.mxu0 0.0
      %261 = vmatpush.msra.mxu0 0.0
      %262 = vmatpush.msra.mxu0 0.0
      %263 = vmatpush.msra.mxu0 0.0
      %264 = vmatpush.msra.mxu0 0.0
      %265 = vmatpush.msra.mxu0 0.0
      %266 = vmatpush.msra.mxu0 0.0
      %267 = vmatpush.msra.mxu0 0.0
      %268 = vmatpush.msra.mxu0 0.0
      %269 = vmatpush.msra.mxu0 0.0
      %270 = vmatpush.msra.mxu0 0.0
      %271 = vmatpush.msra.mxu0 %v225
      %272 = vmatmul.f32.gmra.mxu0 %v254
      %v273 = vpop.f32.mrf.mxu0
      %v274 = vadd.f32 0.0, %v273
      %275 = vdwg.mxu0
      %276 = vmatpush.msra.mxu0 0.0
      %277 = vmatpush.msra.mxu0 0.0
      %278 = vmatpush.msra.mxu0 0.0
      %279 = vmatpush.msra.mxu0 0.0
      %280 = vmatpush.msra.mxu0 0.0
      %281 = vmatpush.msra.mxu0 0.0
      %282 = vmatpush.msra.mxu0 0.0
      %283 = vmatpush.msra.mxu0 0.0
      %284 = vmatpush.msra.mxu0 0.0
      %285 = vmatpush.msra.mxu0 0.0
      %286 = vmatpush.msra.mxu0 0.0
      %287 = vmatpush.msra.mxu0 0.0
      %288 = vmatpush.msra.mxu0 0.0
      %289 = vmatpush.msra.mxu0 0.0
      %290 = vmatpush.msra.mxu0 0.0
      %291 = vmatpush.msra.mxu0 %v226
      %292 = vmatmul.f32.gmra.mxu0 %v254
      %v293 = vpop.f32.mrf.mxu0
      %v294 = vadd.f32 0.0, %v293
      %295 = vdwg.mxu0
      %v297 = vsel %vm252, %v249, 0
      %299 = vmatpush.msra.mxu0 0.0
      %300 = vmatpush.msra.mxu0 0.0
      %301 = vmatpush.msra.mxu0 0.0
      %302 = vmatpush.msra.mxu0 0.0
      %303 = vmatpush.msra.mxu0 0.0
      %304 = vmatpush.msra.mxu0 0.0
      %305 = vmatpush.msra.mxu0 0.0
      %306 = vmatpush.msra.mxu0 0.0
      %307 = vmatpush.msra.mxu0 0.0
      %308 = vmatpush.msra.mxu0 0.0
      %309 = vmatpush.msra.mxu0 0.0
      %310 = vmatpush.msra.mxu0 0.0
      %311 = vmatpush.msra.mxu0 0.0
      %312 = vmatpush.msra.mxu0 0.0
      %313 = vmatpush.msra.mxu0 0.0
      %314 = vmatpush.msra.mxu0 %v247
      %315 = vmatmul.f32.gmra.mxu0 %v297
      %v316 = vpop.f32.mrf.mxu0
      %v317 = vadd.f32 %v274, %v316
      %318 = vdwg.mxu0
      %319 = vmatpush.msra.mxu0 0.0
      %320 = vmatpush.msra.mxu0 0.0
      %321 = vmatpush.msra.mxu0 0.0
      %322 = vmatpush.msra.mxu0 0.0
      %323 = vmatpush.msra.mxu0 0.0
      %324 = vmatpush.msra.mxu0 0.0
      %325 = vmatpush.msra.mxu0 0.0
      %326 = vmatpush.msra.mxu0 0.0
      %327 = vmatpush.msra.mxu0 0.0
      %328 = vmatpush.msra.mxu0 0.0
      %329 = vmatpush.msra.mxu0 0.0
      %330 = vmatpush.msra.mxu0 0.0
      %331 = vmatpush.msra.mxu0 0.0
      %332 = vmatpush.msra.mxu0 0.0
      %333 = vmatpush.msra.mxu0 0.0
      %334 = vmatpush.msra.mxu0 %v248
      %335 = vmatmul.f32.gmra.mxu0 %v297
      %v336 = vpop.f32.mrf.mxu0
      %v337 = vadd.f32 %v294, %v336
      %338 = vdwg.mxu0
      %v339 = vperm.slane %v218, 1
      %v340 = vperm.slane %v218, 5
      %v341 = vperm.slane %v339, 1
      %v342 = vperm.slane %v340, 1
      %vm343 = vcmp.eq.s32.totalorder %v341, 1
      %vm344 = vcmp.eq.s32.totalorder %v342, 1
      %v345 = vsel %vm343, %v233, %v239
      %v346 = vsel %vm344, %v232, %v240
      %s347 = scalar_lea.vmem %s1, 48
      %v348 = vld [vmem:[%s347] sm:$0xff]
      %v350 = vsel %vm252, %v348, 0
      %352 = vmatpush.msra.mxu0 0.0
      %353 = vmatpush.msra.mxu0 0.0
      %354 = vmatpush.msra.mxu0 0.0
      %355 = vmatpush.msra.mxu0 0.0
      %356 = vmatpush.msra.mxu0 0.0
      %357 = vmatpush.msra.mxu0 0.0
      %358 = vmatpush.msra.mxu0 0.0
      %359 = vmatpush.msra.mxu0 0.0
      %360 = vmatpush.msra.mxu0 0.0
      %361 = vmatpush.msra.mxu0 0.0
      %362 = vmatpush.msra.mxu0 0.0
      %363 = vmatpush.msra.mxu0 0.0
      %364 = vmatpush.msra.mxu0 0.0
      %365 = vmatpush.msra.mxu0 0.0
      %366 = vmatpush.msra.mxu0 0.0
      %367 = vmatpush.msra.mxu0 %v345
      %368 = vmatmul.f32.gmra.mxu0 %v350
      %v369 = vpop.f32.mrf.mxu0
      %v370 = vadd.f32 0.0, %v369
      %371 = vdwg.mxu0
      %372 = vmatpush.msra.mxu0 0.0
      %373 = vmatpush.msra.mxu0 0.0
      %374 = vmatpush.msra.mxu0 0.0
      %375 = vmatpush.msra.mxu0 0.0
      %376 = vmatpush.msra.mxu0 0.0
      %377 = vmatpush.msra.mxu0 0.0
      %378 = vmatpush.msra.mxu0 0.0
      %379 = vmatpush.msra.mxu0 0.0
      %380 = vmatpush.msra.mxu0 0.0
      %381 = vmatpush.msra.mxu0 0.0
      %382 = vmatpush.msra.mxu0 0.0
      %383 = vmatpush.msra.mxu0 0.0
      %384 = vmatpush.msra.mxu0 0.0
      %385 = vmatpush.msra.mxu0 0.0
      %386 = vmatpush.msra.mxu0 0.0
      %387 = vmatpush.msra.mxu0 %v346
      %388 = vmatmul.f32.gmra.mxu0 %v350
      %v389 = vpop.f32.mrf.mxu0
      %v390 = vadd.f32 0.0, %v389
      %391 = vdwg.mxu0
      %v392 = vadd.f32 %v317, %v370
      %v393 = vadd.f32 %v337, %v390
      %394 = vrot.lane.b32.xlu0 %v198, 16
      %v395 = vpop.permute.xlu0 %394
      %396 = vrot.lane.b32.xlu0 %v199, 16
      %v397 = vpop.permute.xlu0 %396
      %v398 = vsel %vm231, %v395, %v397
      %v399 = vsel %vm231, %v397, %v395
      %400 = vrot.lane.b32.xlu0 %v198, 112
      %v401 = vpop.permute.xlu0 %400
      %402 = vrot.lane.b32.xlu0 %v199, 112
      %v403 = vpop.permute.xlu0 %402
      %v404 = vsel %vm238, %v401, %v403
      %v405 = vsel %vm238, %v403, %v401
      %v406 = vsel %vm245, %v404, %v399
      %v407 = vsel %vm246, %v405, %v398
      %s408 = scalar_lea.vmem %s1, 8
      %v409 = vld [vmem:[%s408] sm:$0xff]
      %v411 = vsel %vm252, %v409, 0
      %413 = vmatpush.msra.mxu0 0.0
      %414 = vmatpush.msra.mxu0 0.0
      %415 = vmatpush.msra.mxu0 0.0
      %416 = vmatpush.msra.mxu0 0.0
      %417 = vmatpush.msra.mxu0 0.0
      %418 = vmatpush.msra.mxu0 0.0
      %419 = vmatpush.msra.mxu0 0.0
      %420 = vmatpush.msra.mxu0 0.0
      %421 = vmatpush.msra.mxu0 0.0
      %422 = vmatpush.msra.mxu0 0.0
      %423 = vmatpush.msra.mxu0 0.0
      %424 = vmatpush.msra.mxu0 0.0
      %425 = vmatpush.msra.mxu0 0.0
      %426 = vmatpush.msra.mxu0 0.0
      %427 = vmatpush.msra.mxu0 0.0
      %428 = vmatpush.msra.mxu0 %v406
      %429 = vmatmul.f32.gmra.mxu0 %v411
      %v430 = vpop.f32.mrf.mxu0
      %v431 = vadd.f32 0.0, %v430
      %432 = vdwg.mxu0
      %433 = vmatpush.msra.mxu0 0.0
      %434 = vmatpush.msra.mxu0 0.0
      %435 = vmatpush.msra.mxu0 0.0
      %436 = vmatpush.msra.mxu0 0.0
      %437 = vmatpush.msra.mxu0 0.0
      %438 = vmatpush.msra.mxu0 0.0
      %439 = vmatpush.msra.mxu0 0.0
      %440 = vmatpush.msra.mxu0 0.0
      %441 = vmatpush.msra.mxu0 0.0
      %442 = vmatpush.msra.mxu0 0.0
      %443 = vmatpush.msra.mxu0 0.0
      %444 = vmatpush.msra.mxu0 0.0
      %445 = vmatpush.msra.mxu0 0.0
      %446 = vmatpush.msra.mxu0 0.0
      %447 = vmatpush.msra.mxu0 0.0
      %448 = vmatpush.msra.mxu0 %v407
      %449 = vmatmul.f32.gmra.mxu0 %v411
      %v450 = vpop.f32.mrf.mxu0
      %v451 = vadd.f32 0.0, %v450
      %452 = vdwg.mxu0
      %v453 = vadd.f32 %v392, %v431
      %v454 = vadd.f32 %v393, %v451
      %s455 = scalar_lea.vmem %s1, 32
      %v456 = vld [vmem:[%s455] sm:$0xff]
      %v458 = vsel %vm252, %v456, 0
      %460 = vmatpush.msra.mxu0 0.0
      %461 = vmatpush.msra.mxu0 0.0
      %462 = vmatpush.msra.mxu0 0.0
      %463 = vmatpush.msra.mxu0 0.0
      %464 = vmatpush.msra.mxu0 0.0
      %465 = vmatpush.msra.mxu0 0.0
      %466 = vmatpush.msra.mxu0 0.0
      %467 = vmatpush.msra.mxu0 0.0
      %468 = vmatpush.msra.mxu0 0.0
      %469 = vmatpush.msra.mxu0 0.0
      %470 = vmatpush.msra.mxu0 0.0
      %471 = vmatpush.msra.mxu0 0.0
      %472 = vmatpush.msra.mxu0 0.0
      %473 = vmatpush.msra.mxu0 0.0
      %474 = vmatpush.msra.mxu0 0.0
      %475 = vmatpush.msra.mxu0 %v198
      %476 = vmatmul.f32.gmra.mxu0 %v458
      %v477 = vpop.f32.mrf.mxu0
      %v478 = vadd.f32 0.0, %v477
      %479 = vdwg.mxu0
      %480 = vmatpush.msra.mxu0 0.0
      %481 = vmatpush.msra.mxu0 0.0
      %482 = vmatpush.msra.mxu0 0.0
      %483 = vmatpush.msra.mxu0 0.0
      %484 = vmatpush.msra.mxu0 0.0
      %485 = vmatpush.msra.mxu0 0.0
      %486 = vmatpush.msra.mxu0 0.0
      %487 = vmatpush.msra.mxu0 0.0
      %488 = vmatpush.msra.mxu0 0.0
      %489 = vmatpush.msra.mxu0 0.0
      %490 = vmatpush.msra.mxu0 0.0
      %491 = vmatpush.msra.mxu0 0.0
      %492 = vmatpush.msra.mxu0 0.0
      %493 = vmatpush.msra.mxu0 0.0
      %494 = vmatpush.msra.mxu0 0.0
      %495 = vmatpush.msra.mxu0 %v199
      %496 = vmatmul.f32.gmra.mxu0 %v458
      %v497 = vpop.f32.mrf.mxu0
      %v498 = vadd.f32 0.0, %v497
      %499 = vdwg.mxu0
      %v500 = vadd.f32 %v453, %v478
      %v501 = vadd.f32 %v454, %v498
      %v502 = vsel %vm343, %v399, %v404
      %v503 = vsel %vm344, %v398, %v405
      %s504 = scalar_lea.vmem %s1, 56
      %v505 = vld [vmem:[%s504] sm:$0xff]
      %v507 = vsel %vm252, %v505, 0
      %509 = vmatpush.msra.mxu0 0.0
      %510 = vmatpush.msra.mxu0 0.0
      %511 = vmatpush.msra.mxu0 0.0
      %512 = vmatpush.msra.mxu0 0.0
      %513 = vmatpush.msra.mxu0 0.0
      %514 = vmatpush.msra.mxu0 0.0
      %515 = vmatpush.msra.mxu0 0.0
      %516 = vmatpush.msra.mxu0 0.0
      %517 = vmatpush.msra.mxu0 0.0
      %518 = vmatpush.msra.mxu0 0.0
      %519 = vmatpush.msra.mxu0 0.0
      %520 = vmatpush.msra.mxu0 0.0
      %521 = vmatpush.msra.mxu0 0.0
      %522 = vmatpush.msra.mxu0 0.0
      %523 = vmatpush.msra.mxu0 0.0
      %524 = vmatpush.msra.mxu0 %v502
      %525 = vmatmul.f32.gmra.mxu0 %v507
      %v526 = vpop.f32.mrf.mxu0
      %v527 = vadd.f32 0.0, %v526
      %528 = vdwg.mxu0
      %529 = vmatpush.msra.mxu0 0.0
      %530 = vmatpush.msra.mxu0 0.0
      %531 = vmatpush.msra.mxu0 0.0
      %532 = vmatpush.msra.mxu0 0.0
      %533 = vmatpush.msra.mxu0 0.0
      %534 = vmatpush.msra.mxu0 0.0
      %535 = vmatpush.msra.mxu0 0.0
      %536 = vmatpush.msra.mxu0 0.0
      %537 = vmatpush.msra.mxu0 0.0
      %538 = vmatpush.msra.mxu0 0.0
      %539 = vmatpush.msra.mxu0 0.0
      %540 = vmatpush.msra.mxu0 0.0
      %541 = vmatpush.msra.mxu0 0.0
      %542 = vmatpush.msra.mxu0 0.0
      %543 = vmatpush.msra.mxu0 0.0
      %544 = vmatpush.msra.mxu0 %v503
      %545 = vmatmul.f32.gmra.mxu0 %v507
      %v546 = vpop.f32.mrf.mxu0
      %v547 = vadd.f32 0.0, %v546
      %548 = vdwg.mxu0
      %v549 = vadd.f32 %v500, %v527
      %v550 = vadd.f32 %v501, %v547
      %v551 = vperm.slane %v218, 3
      %v552 = vperm.slane %v218, 7
      %v553 = vperm.slane %v551, 3
      %v554 = vperm.slane %v552, 3
      %vm555 = vcmp.eq.s32.totalorder %v553, 1
      %vm556 = vcmp.eq.s32.totalorder %v554, 1
      %v557 = vsel %vm555, %v210, %v216
      %v558 = vsel %vm556, %v209, %v217
      %559 = vrot.lane.b32.xlu0 %v557, 16
      %v560 = vpop.permute.xlu0 %559
      %561 = vrot.lane.b32.xlu0 %v558, 16
      %v562 = vpop.permute.xlu0 %561
      %v563 = vsel %vm231, %v560, %v562
      %v564 = vsel %vm231, %v562, %v560
      %565 = vrot.lane.b32.xlu0 %v557, 112
      %v566 = vpop.permute.xlu0 %565
      %567 = vrot.lane.b32.xlu0 %v558, 112
      %v568 = vpop.permute.xlu0 %567
      %v569 = vsel %vm238, %v566, %v568
      %v570 = vsel %vm238, %v568, %v566
      %v571 = vsel %vm245, %v569, %v564
      %v572 = vsel %vm246, %v570, %v563
      %s573 = scalar_lea.vmem %s1, 16
      %v574 = vld [vmem:[%s573] sm:$0xff]
      %v576 = vsel %vm252, %v574, 0
      %578 = vmatpush.msra.mxu0 0.0
      %579 = vmatpush.msra.mxu0 0.0
      %580 = vmatpush.msra.mxu0 0.0
      %581 = vmatpush.msra.mxu0 0.0
      %582 = vmatpush.msra.mxu0 0.0
      %583 = vmatpush.msra.mxu0 0.0
      %584 = vmatpush.msra.mxu0 0.0
      %585 = vmatpush.msra.mxu0 0.0
      %586 = vmatpush.msra.mxu0 0.0
      %587 = vmatpush.msra.mxu0 0.0
      %588 = vmatpush.msra.mxu0 0.0
      %589 = vmatpush.msra.mxu0 0.0
      %590 = vmatpush.msra.mxu0 0.0
      %591 = vmatpush.msra.mxu0 0.0
      %592 = vmatpush.msra.mxu0 0.0
      %593 = vmatpush.msra.mxu0 %v571
      %594 = vmatmul.f32.gmra.mxu0 %v576
      %v595 = vpop.f32.mrf.mxu0
      %v596 = vadd.f32 0.0, %v595
      %597 = vdwg.mxu0
      %598 = vmatpush.msra.mxu0 0.0
      %599 = vmatpush.msra.mxu0 0.0
      %600 = vmatpush.msra.mxu0 0.0
      %601 = vmatpush.msra.mxu0 0.0
      %602 = vmatpush.msra.mxu0 0.0
      %603 = vmatpush.msra.mxu0 0.0
      %604 = vmatpush.msra.mxu0 0.0
      %605 = vmatpush.msra.mxu0 0.0
      %606 = vmatpush.msra.mxu0 0.0
      %607 = vmatpush.msra.mxu0 0.0
      %608 = vmatpush.msra.mxu0 0.0
      %609 = vmatpush.msra.mxu0 0.0
      %610 = vmatpush.msra.mxu0 0.0
      %611 = vmatpush.msra.mxu0 0.0
      %612 = vmatpush.msra.mxu0 0.0
      %613 = vmatpush.msra.mxu0 %v572
      %614 = vmatmul.f32.gmra.mxu0 %v576
      %v615 = vpop.f32.mrf.mxu0
      %v616 = vadd.f32 0.0, %v615
      %617 = vdwg.mxu0
      %v618 = vadd.f32 %v549, %v596
      %v619 = vadd.f32 %v550, %v616
      %s620 = scalar_lea.vmem %s1, 40
      %v621 = vld [vmem:[%s620] sm:$0xff]
      %v623 = vsel %vm252, %v621, 0
      %625 = vmatpush.msra.mxu0 0.0
      %626 = vmatpush.msra.mxu0 0.0
      %627 = vmatpush.msra.mxu0 0.0
      %628 = vmatpush.msra.mxu0 0.0
      %629 = vmatpush.msra.mxu0 0.0
      %630 = vmatpush.msra.mxu0 0.0
      %631 = vmatpush.msra.mxu0 0.0
      %632 = vmatpush.msra.mxu0 0.0
      %633 = vmatpush.msra.mxu0 0.0
      %634 = vmatpush.msra.mxu0 0.0
      %635 = vmatpush.msra.mxu0 0.0
      %636 = vmatpush.msra.mxu0 0.0
      %637 = vmatpush.msra.mxu0 0.0
      %638 = vmatpush.msra.mxu0 0.0
      %639 = vmatpush.msra.mxu0 0.0
      %640 = vmatpush.msra.mxu0 %v557
      %641 = vmatmul.f32.gmra.mxu0 %v623
      %v642 = vpop.f32.mrf.mxu0
      %v643 = vadd.f32 0.0, %v642
      %644 = vdwg.mxu0
      %645 = vmatpush.msra.mxu0 0.0
      %646 = vmatpush.msra.mxu0 0.0
      %647 = vmatpush.msra.mxu0 0.0
      %648 = vmatpush.msra.mxu0 0.0
      %649 = vmatpush.msra.mxu0 0.0
      %650 = vmatpush.msra.mxu0 0.0
      %651 = vmatpush.msra.mxu0 0.0
      %652 = vmatpush.msra.mxu0 0.0
      %653 = vmatpush.msra.mxu0 0.0
      %654 = vmatpush.msra.mxu0 0.0
      %655 = vmatpush.msra.mxu0 0.0
      %656 = vmatpush.msra.mxu0 0.0
      %657 = vmatpush.msra.mxu0 0.0
      %658 = vmatpush.msra.mxu0 0.0
      %659 = vmatpush.msra.mxu0 0.0
      %660 = vmatpush.msra.mxu0 %v558
      %661 = vmatmul.f32.gmra.mxu0 %v623
      %v662 = vpop.f32.mrf.mxu0
      %v663 = vadd.f32 0.0, %v662
      %664 = vdwg.mxu0
      %v665 = vadd.f32 %v618, %v643
      %v666 = vadd.f32 %v619, %v663
      %v667 = vsel %vm343, %v564, %v569
      %v668 = vsel %vm344, %v563, %v570
      %s669 = scalar_lea.vmem %s1, 64
      %v670 = vld [vmem:[%s669] sm:$0xff]
      %v672 = vsel %vm252, %v670, 0
      %674 = vmatpush.msra.mxu0 0.0
      %675 = vmatpush.msra.mxu0 0.0
      %676 = vmatpush.msra.mxu0 0.0
      %677 = vmatpush.msra.mxu0 0.0
      %678 = vmatpush.msra.mxu0 0.0
      %679 = vmatpush.msra.mxu0 0.0
      %680 = vmatpush.msra.mxu0 0.0
      %681 = vmatpush.msra.mxu0 0.0
      %682 = vmatpush.msra.mxu0 0.0
      %683 = vmatpush.msra.mxu0 0.0
      %684 = vmatpush.msra.mxu0 0.0
      %685 = vmatpush.msra.mxu0 0.0
      %686 = vmatpush.msra.mxu0 0.0
      %687 = vmatpush.msra.mxu0 0.0
      %688 = vmatpush.msra.mxu0 0.0
      %689 = vmatpush.msra.mxu0 %v667
      %690 = vmatmul.f32.gmra.mxu0 %v672
      %v691 = vpop.f32.mrf.mxu0
      %v692 = vadd.f32 0.0, %v691
      %693 = vdwg.mxu0
      %694 = vmatpush.msra.mxu0 0.0
      %695 = vmatpush.msra.mxu0 0.0
      %696 = vmatpush.msra.mxu0 0.0
      %697 = vmatpush.msra.mxu0 0.0
      %698 = vmatpush.msra.mxu0 0.0
      %699 = vmatpush.msra.mxu0 0.0
      %700 = vmatpush.msra.mxu0 0.0
      %701 = vmatpush.msra.mxu0 0.0
      %702 = vmatpush.msra.mxu0 0.0
      %703 = vmatpush.msra.mxu0 0.0
      %704 = vmatpush.msra.mxu0 0.0
      %705 = vmatpush.msra.mxu0 0.0
      %706 = vmatpush.msra.mxu0 0.0
      %707 = vmatpush.msra.mxu0 0.0
      %708 = vmatpush.msra.mxu0 0.0
      %709 = vmatpush.msra.mxu0 %v668
      %710 = vmatmul.f32.gmra.mxu0 %v672
      %v711 = vpop.f32.mrf.mxu0
      %v712 = vadd.f32 0.0, %v711
      %713 = vdwg.mxu0
      %v714 = vadd.f32 %v665, %v692
      %v715 = vadd.f32 %v666, %v712
      %v716 = vadd.f32 %v714, %v715
      %717 = vadd.xlane.f32.xlu0 %v716
      %v718 = vpop.xlane.xlu0 %717
      %v719 = vrcp.pop 256.0
      %v720 = vmul.f32 256.0, %v719
      %v721 = vsub.f32 1.0, %v720
      %v722 = vmul.f32 %v719, %v721
      %v723 = vadd.f32 %v719, %v722
      %vm724 = vweird.f32 %v719
      %v725 = vsel %vm724, %v719, %v723
      %v726 = vmul.f32 %v718, %v725
      %v727 = vmul.f32 %v714, %v714
      %v728 = vmul.f32 %v715, %v715
      %v729 = vadd.f32 %v727, %v728
      %730 = vadd.xlane.f32.xlu0 %v729
      %v731 = vpop.xlane.xlu0 %730
      %v732 = vmul.f32 %v731, %v725
      %v733 = vmul.f32 %v726, %v726
      %v734 = vsub.f32 %v732, %v733
      %v735 = vmax.f32 %v734, 0.0
      %v736 = vsub.f32 %v714, %v726
      %v737 = vsub.f32 %v715, %v726
      %v738 = vadd.f32 %v735, 1e-05
      %v739 = vrsqrt.pop %v738
      %v740 = vmul.f32 %v739, %v738
      %v741 = vmul.f32 %v740, %v739
      %v742 = vmul.f32 0.5, %v741
      %v743 = vsub.f32 1.5, %v742
      %v744 = vmul.f32 %v739, %v743
      %vm745 = vweird.f32 %v738
      %vm746 = vweird.f32 %v739
      %vm747 = vmor %vm745, %vm746
      %v748 = vsel %vm747, %v739, %v744
      %v749 = vmul.f32 %v736, %v748
      %v750 = vmul.f32 %v737, %v748
      %v751 = vmax.f32 %v749, 0.0
      %v752 = vmax.f32 %v750, 0.0
      %753 = vrot.lane.b32.xlu0 %v751, 1
      %v754 = vpop.permute.xlu0 %753
      %755 = vrot.lane.b32.xlu0 %v752, 1
      %v756 = vpop.permute.xlu0 %755
      %v757 = vsel %vm208, %v754, %v756
      %v758 = vsel %vm208, %v756, %v754
      %759 = vrot.lane.b32.xlu0 %v751, 127
      %v760 = vpop.permute.xlu0 %759
      %761 = vrot.lane.b32.xlu0 %v752, 127
      %v762 = vpop.permute.xlu0 %761
      %v763 = vsel %vm215, %v760, %v762
      %v764 = vsel %vm215, %v762, %v760
      %v765 = vsel %vm223, %v763, %v758
      %v766 = vsel %vm224, %v764, %v757
      %767 = vrot.lane.b32.xlu0 %v765, 16
      %v768 = vpop.permute.xlu0 %767
      %769 = vrot.lane.b32.xlu0 %v766, 16
      %v770 = vpop.permute.xlu0 %769
      %v771 = vsel %vm231, %v768, %v770
      %v772 = vsel %vm231, %v770, %v768
      %773 = vrot.lane.b32.xlu0 %v765, 112
      %v774 = vpop.permute.xlu0 %773
      %775 = vrot.lane.b32.xlu0 %v766, 112
      %v776 = vpop.permute.xlu0 %775
      %v777 = vsel %vm238, %v774, %v776
      %v778 = vsel %vm238, %v776, %v774
      %v779 = vsel %vm245, %v777, %v772
      %v780 = vsel %vm246, %v778, %v771
      %v781 = vld [vmem:[%s2] sm:$0xff]
      %s782 = scalar_lea.vmem %s2, 24
      %v783 = vld [vmem:[%s782] sm:$0xff]
      %v785 = vsel %vm252, %v783, 0
      %787 = vmatpush.msra.mxu0 0.0
      %788 = vmatpush.msra.mxu0 0.0
      %789 = vmatpush.msra.mxu0 0.0
      %790 = vmatpush.msra.mxu0 0.0
      %791 = vmatpush.msra.mxu0 0.0
      %792 = vmatpush.msra.mxu0 0.0
      %793 = vmatpush.msra.mxu0 0.0
      %794 = vmatpush.msra.mxu0 0.0
      %795 = vmatpush.msra.mxu0 0.0
      %796 = vmatpush.msra.mxu0 0.0
      %797 = vmatpush.msra.mxu0 0.0
      %798 = vmatpush.msra.mxu0 0.0
      %799 = vmatpush.msra.mxu0 0.0
      %800 = vmatpush.msra.mxu0 0.0
      %801 = vmatpush.msra.mxu0 0.0
      %802 = vmatpush.msra.mxu0 %v765
      %803 = vmatmul.f32.gmra.mxu0 %v785
      %v804 = vpop.f32.mrf.mxu0
      %v805 = vadd.f32 0.0, %v804
      %806 = vdwg.mxu0
      %807 = vmatpush.msra.mxu0 0.0
      %808 = vmatpush.msra.mxu0 0.0
      %809 = vmatpush.msra.mxu0 0.0
      %810 = vmatpush.msra.mxu0 0.0
      %811 = vmatpush.msra.mxu0 0.0
      %812 = vmatpush.msra.mxu0 0.0
      %813 = vmatpush.msra.mxu0 0.0
      %814 = vmatpush.msra.mxu0 0.0
      %815 = vmatpush.msra.mxu0 0.0
      %816 = vmatpush.msra.mxu0 0.0
      %817 = vmatpush.msra.mxu0 0.0
      %818 = vmatpush.msra.mxu0 0.0
      %819 = vmatpush.msra.mxu0 0.0
      %820 = vmatpush.msra.mxu0 0.0
      %821 = vmatpush.msra.mxu0 0.0
      %822 = vmatpush.msra.mxu0 %v766
      %823 = vmatmul.f32.gmra.mxu0 %v785
      %v824 = vpop.f32.mrf.mxu0
      %v825 = vadd.f32 0.0, %v824
      %826 = vdwg.mxu0
      %v828 = vsel %vm252, %v781, 0
      %830 = vmatpush.msra.mxu0 0.0
      %831 = vmatpush.msra.mxu0 0.0
      %832 = vmatpush.msra.mxu0 0.0
      %833 = vmatpush.msra.mxu0 0.0
      %834 = vmatpush.msra.mxu0 0.0
      %835 = vmatpush.msra.mxu0 0.0
      %836 = vmatpush.msra.mxu0 0.0
      %837 = vmatpush.msra.mxu0 0.0
      %838 = vmatpush.msra.mxu0 0.0
      %839 = vmatpush.msra.mxu0 0.0
      %840 = vmatpush.msra.mxu0 0.0
      %841 = vmatpush.msra.mxu0 0.0
      %842 = vmatpush.msra.mxu0 0.0
      %843 = vmatpush.msra.mxu0 0.0
      %844 = vmatpush.msra.mxu0 0.0
      %845 = vmatpush.msra.mxu0 %v779
      %846 = vmatmul.f32.gmra.mxu0 %v828
      %v847 = vpop.f32.mrf.mxu0
      %v848 = vadd.f32 %v805, %v847
      %849 = vdwg.mxu0
      %850 = vmatpush.msra.mxu0 0.0
      %851 = vmatpush.msra.mxu0 0.0
      %852 = vmatpush.msra.mxu0 0.0
      %853 = vmatpush.msra.mxu0 0.0
      %854 = vmatpush.msra.mxu0 0.0
      %855 = vmatpush.msra.mxu0 0.0
      %856 = vmatpush.msra.mxu0 0.0
      %857 = vmatpush.msra.mxu0 0.0
      %858 = vmatpush.msra.mxu0 0.0
      %859 = vmatpush.msra.mxu0 0.0
      %860 = vmatpush.msra.mxu0 0.0
      %861 = vmatpush.msra.mxu0 0.0
      %862 = vmatpush.msra.mxu0 0.0
      %863 = vmatpush.msra.mxu0 0.0
      %864 = vmatpush.msra.mxu0 0.0
      %865 = vmatpush.msra.mxu0 %v780
      %866 = vmatmul.f32.gmra.mxu0 %v828
      %v867 = vpop.f32.mrf.mxu0
      %v868 = vadd.f32 %v825, %v867
      %869 = vdwg.mxu0
      %v870 = vsel %vm343, %v772, %v777
      %v871 = vsel %vm344, %v771, %v778
      %s872 = scalar_lea.vmem %s2, 48
      %v873 = vld [vmem:[%s872] sm:$0xff]
      %v875 = vsel %vm252, %v873, 0
      %877 = vmatpush.msra.mxu0 0.0
      %878 = vmatpush.msra.mxu0 0.0
      %879 = vmatpush.msra.mxu0 0.0
      %880 = vmatpush.msra.mxu0 0.0
      %881 = vmatpush.msra.mxu0 0.0
      %882 = vmatpush.msra.mxu0 0.0
      %883 = vmatpush.msra.mxu0 0.0
      %884 = vmatpush.msra.mxu0 0.0
      %885 = vmatpush.msra.mxu0 0.0
      %886 = vmatpush.msra.mxu0 0.0
      %887 = vmatpush.msra.mxu0 0.0
      %888 = vmatpush.msra.mxu0 0.0
      %889 = vmatpush.msra.mxu0 0.0
      %890 = vmatpush.msra.mxu0 0.0
      %891 = vmatpush.msra.mxu0 0.0
      %892 = vmatpush.msra.mxu0 %v870
      %893 = vmatmul.f32.gmra.mxu0 %v875
      %v894 = vpop.f32.mrf.mxu0
      %v895 = vadd.f32 0.0, %v894
      %896 = vdwg.mxu0
      %897 = vmatpush.msra.mxu0 0.0
      %898 = vmatpush.msra.mxu0 0.0
      %899 = vmatpush.msra.mxu0 0.0
      %900 = vmatpush.msra.mxu0 0.0
      %901 = vmatpush.msra.mxu0 0.0
      %902 = vmatpush.msra.mxu0 0.0
      %903 = vmatpush.msra.mxu0 0.0
      %904 = vmatpush.msra.mxu0 0.0
      %905 = vmatpush.msra.mxu0 0.0
      %906 = vmatpush.msra.mxu0 0.0
      %907 = vmatpush.msra.mxu0 0.0
      %908 = vmatpush.msra.mxu0 0.0
      %909 = vmatpush.msra.mxu0 0.0
      %910 = vmatpush.msra.mxu0 0.0
      %911 = vmatpush.msra.mxu0 0.0
      %912 = vmatpush.msra.mxu0 %v871
      %913 = vmatmul.f32.gmra.mxu0 %v875
      %v914 = vpop.f32.mrf.mxu0
      %v915 = vadd.f32 0.0, %v914
      %916 = vdwg.mxu0
      %v917 = vadd.f32 %v848, %v895
      %v918 = vadd.f32 %v868, %v915
      %919 = vrot.lane.b32.xlu0 %v751, 16
      %v920 = vpop.permute.xlu0 %919
      %921 = vrot.lane.b32.xlu0 %v752, 16
      %v922 = vpop.permute.xlu0 %921
      %v923 = vsel %vm231, %v920, %v922
      %v924 = vsel %vm231, %v922, %v920
      %925 = vrot.lane.b32.xlu0 %v751, 112
      %v926 = vpop.permute.xlu0 %925
      %927 = vrot.lane.b32.xlu0 %v752, 112
      %v928 = vpop.permute.xlu0 %927
      %v929 = vsel %vm238, %v926, %v928
      %v930 = vsel %vm238, %v928, %v926
      %v931 = vsel %vm245, %v929, %v924
      %v932 = vsel %vm246, %v930, %v923
      %s933 = scalar_lea.vmem %s2, 8
      %v934 = vld [vmem:[%s933] sm:$0xff]
      %v936 = vsel %vm252, %v934, 0
      %938 = vmatpush.msra.mxu0 0.0
      %939 = vmatpush.msra.mxu0 0.0
      %940 = vmatpush.msra.mxu0 0.0
      %941 = vmatpush.msra.mxu0 0.0
      %942 = vmatpush.msra.mxu0 0.0
      %943 = vmatpush.msra.mxu0 0.0
      %944 = vmatpush.msra.mxu0 0.0
      %945 = vmatpush.msra.mxu0 0.0
      %946 = vmatpush.msra.mxu0 0.0
      %947 = vmatpush.msra.mxu0 0.0
      %948 = vmatpush.msra.mxu0 0.0
      %949 = vmatpush.msra.mxu0 0.0
      %950 = vmatpush.msra.mxu0 0.0
      %951 = vmatpush.msra.mxu0 0.0
      %952 = vmatpush.msra.mxu0 0.0
      %953 = vmatpush.msra.mxu0 %v931
      %954 = vmatmul.f32.gmra.mxu0 %v936
      %v955 = vpop.f32.mrf.mxu0
      %v956 = vadd.f32 0.0, %v955
      %957 = vdwg.mxu0
      %958 = vmatpush.msra.mxu0 0.0
      %959 = vmatpush.msra.mxu0 0.0
      %960 = vmatpush.msra.mxu0 0.0
      %961 = vmatpush.msra.mxu0 0.0
      %962 = vmatpush.msra.mxu0 0.0
      %963 = vmatpush.msra.mxu0 0.0
      %964 = vmatpush.msra.mxu0 0.0
      %965 = vmatpush.msra.mxu0 0.0
      %966 = vmatpush.msra.mxu0 0.0
      %967 = vmatpush.msra.mxu0 0.0
      %968 = vmatpush.msra.mxu0 0.0
      %969 = vmatpush.msra.mxu0 0.0
      %970 = vmatpush.msra.mxu0 0.0
      %971 = vmatpush.msra.mxu0 0.0
      %972 = vmatpush.msra.mxu0 0.0
      %973 = vmatpush.msra.mxu0 %v932
      %974 = vmatmul.f32.gmra.mxu0 %v936
      %v975 = vpop.f32.mrf.mxu0
      %v976 = vadd.f32 0.0, %v975
      %977 = vdwg.mxu0
      %v978 = vadd.f32 %v917, %v956
      %v979 = vadd.f32 %v918, %v976
      %s980 = scalar_lea.vmem %s2, 32
      %v981 = vld [vmem:[%s980] sm:$0xff]
      %v983 = vsel %vm252, %v981, 0
      %985 = vmatpush.msra.mxu0 0.0
      %986 = vmatpush.msra.mxu0 0.0
      %987 = vmatpush.msra.mxu0 0.0
      %988 = vmatpush.msra.mxu0 0.0
      %989 = vmatpush.msra.mxu0 0.0
      %990 = vmatpush.msra.mxu0 0.0
      %991 = vmatpush.msra.mxu0 0.0
      %992 = vmatpush.msra.mxu0 0.0
      %993 = vmatpush.msra.mxu0 0.0
      %994 = vmatpush.msra.mxu0 0.0
      %995 = vmatpush.msra.mxu0 0.0
      %996 = vmatpush.msra.mxu0 0.0
      %997 = vmatpush.msra.mxu0 0.0
      %998 = vmatpush.msra.mxu0 0.0
      %999 = vmatpush.msra.mxu0 0.0
      %1000 = vmatpush.msra.mxu0 %v751
      %1001 = vmatmul.f32.gmra.mxu0 %v983
      %v1002 = vpop.f32.mrf.mxu0
      %v1003 = vadd.f32 0.0, %v1002
      %1004 = vdwg.mxu0
      %1005 = vmatpush.msra.mxu0 0.0
      %1006 = vmatpush.msra.mxu0 0.0
      %1007 = vmatpush.msra.mxu0 0.0
      %1008 = vmatpush.msra.mxu0 0.0
      %1009 = vmatpush.msra.mxu0 0.0
      %1010 = vmatpush.msra.mxu0 0.0
      %1011 = vmatpush.msra.mxu0 0.0
      %1012 = vmatpush.msra.mxu0 0.0
      %1013 = vmatpush.msra.mxu0 0.0
      %1014 = vmatpush.msra.mxu0 0.0
      %1015 = vmatpush.msra.mxu0 0.0
      %1016 = vmatpush.msra.mxu0 0.0
      %1017 = vmatpush.msra.mxu0 0.0
      %1018 = vmatpush.msra.mxu0 0.0
      %1019 = vmatpush.msra.mxu0 0.0
      %1020 = vmatpush.msra.mxu0 %v752
      %1021 = vmatmul.f32.gmra.mxu0 %v983
      %v1022 = vpop.f32.mrf.mxu0
      %v1023 = vadd.f32 0.0, %v1022
      %1024 = vdwg.mxu0
      %v1025 = vadd.f32 %v978, %v1003
      %v1026 = vadd.f32 %v979, %v1023
      %v1027 = vsel %vm343, %v924, %v929
      %v1028 = vsel %vm344, %v923, %v930
      %s1029 = scalar_lea.vmem %s2, 56
      %v1030 = vld [vmem:[%s1029] sm:$0xff]
      %v1032 = vsel %vm252, %v1030, 0
      %1034 = vmatpush.msra.mxu0 0.0
      %1035 = vmatpush.msra.mxu0 0.0
      %1036 = vmatpush.msra.mxu0 0.0
      %1037 = vmatpush.msra.mxu0 0.0
      %1038 = vmatpush.msra.mxu0 0.0
      %1039 = vmatpush.msra.mxu0 0.0
      %1040 = vmatpush.msra.mxu0 0.0
      %1041 = vmatpush.msra.mxu0 0.0
      %1042 = vmatpush.msra.mxu0 0.0
      %1043 = vmatpush.msra.mxu0 0.0
      %1044 = vmatpush.msra.mxu0 0.0
      %1045 = vmatpush.msra.mxu0 0.0
      %1046 = vmatpush.msra.mxu0 0.0
      %1047 = vmatpush.msra.mxu0 0.0
      %1048 = vmatpush.msra.mxu0 0.0
      %1049 = vmatpush.msra.mxu0 %v1027
      %1050 = vmatmul.f32.gmra.mxu0 %v1032
      %v1051 = vpop.f32.mrf.mxu0
      %v1052 = vadd.f32 0.0, %v1051
      %1053 = vdwg.mxu0
      %1054 = vmatpush.msra.mxu0 0.0
      %1055 = vmatpush.msra.mxu0 0.0
      %1056 = vmatpush.msra.mxu0 0.0
      %1057 = vmatpush.msra.mxu0 0.0
      %1058 = vmatpush.msra.mxu0 0.0
      %1059 = vmatpush.msra.mxu0 0.0
      %1060 = vmatpush.msra.mxu0 0.0
      %1061 = vmatpush.msra.mxu0 0.0
      %1062 = vmatpush.msra.mxu0 0.0
      %1063 = vmatpush.msra.mxu0 0.0
      %1064 = vmatpush.msra.mxu0 0.0
      %1065 = vmatpush.msra.mxu0 0.0
      %1066 = vmatpush.msra.mxu0 0.0
      %1067 = vmatpush.msra.mxu0 0.0
      %1068 = vmatpush.msra.mxu0 0.0
      %1069 = vmatpush.msra.mxu0 %v1028
      %1070 = vmatmul.f32.gmra.mxu0 %v1032
      %v1071 = vpop.f32.mrf.mxu0
      %v1072 = vadd.f32 0.0, %v1071
      %1073 = vdwg.mxu0
      %v1074 = vadd.f32 %v1025, %v1052
      %v1075 = vadd.f32 %v1026, %v1072
      %v1076 = vsel %vm555, %v758, %v763
      %v1077 = vsel %vm556, %v757, %v764
      %1078 = vrot.lane.b32.xlu0 %v1076, 16
      %v1079 = vpop.permute.xlu0 %1078
      %1080 = vrot.lane.b32.xlu0 %v1077, 16
      %v1081 = vpop.permute.xlu0 %1080
      %v1082 = vsel %vm231, %v1079, %v1081
      %v1083 = vsel %vm231, %v1081, %v1079
      %1084 = vrot.lane.b32.xlu0 %v1076, 112
      %v1085 = vpop.permute.xlu0 %1084
      %1086 = vrot.lane.b32.xlu0 %v1077, 112
      %v1087 = vpop.permute.xlu0 %1086
      %v1088 = vsel %vm238, %v1085, %v1087
      %v1089 = vsel %vm238, %v1087, %v1085
      %v1090 = vsel %vm245, %v1088, %v1083
      %v1091 = vsel %vm246, %v1089, %v1082
      %s1092 = scalar_lea.vmem %s2, 16
      %v1093 = vld [vmem:[%s1092] sm:$0xff]
      %v1095 = vsel %vm252, %v1093, 0
      %1097 = vmatpush.msra.mxu0 0.0
      %1098 = vmatpush.msra.mxu0 0.0
      %1099 = vmatpush.msra.mxu0 0.0
      %1100 = vmatpush.msra.mxu0 0.0
      %1101 = vmatpush.msra.mxu0 0.0
      %1102 = vmatpush.msra.mxu0 0.0
      %1103 = vmatpush.msra.mxu0 0.0
      %1104 = vmatpush.msra.mxu0 0.0
      %1105 = vmatpush.msra.mxu0 0.0
      %1106 = vmatpush.msra.mxu0 0.0
      %1107 = vmatpush.msra.mxu0 0.0
      %1108 = vmatpush.msra.mxu0 0.0
      %1109 = vmatpush.msra.mxu0 0.0
      %1110 = vmatpush.msra.mxu0 0.0
      %1111 = vmatpush.msra.mxu0 0.0
      %1112 = vmatpush.msra.mxu0 %v1090
      %1113 = vmatmul.f32.gmra.mxu0 %v1095
      %v1114 = vpop.f32.mrf.mxu0
      %v1115 = vadd.f32 0.0, %v1114
      %1116 = vdwg.mxu0
      %1117 = vmatpush.msra.mxu0 0.0
      %1118 = vmatpush.msra.mxu0 0.0
      %1119 = vmatpush.msra.mxu0 0.0
      %1120 = vmatpush.msra.mxu0 0.0
      %1121 = vmatpush.msra.mxu0 0.0
      %1122 = vmatpush.msra.mxu0 0.0
      %1123 = vmatpush.msra.mxu0 0.0
      %1124 = vmatpush.msra.mxu0 0.0
      %1125 = vmatpush.msra.mxu0 0.0
      %1126 = vmatpush.msra.mxu0 0.0
      %1127 = vmatpush.msra.mxu0 0.0
      %1128 = vmatpush.msra.mxu0 0.0
      %1129 = vmatpush.msra.mxu0 0.0
      %1130 = vmatpush.msra.mxu0 0.0
      %1131 = vmatpush.msra.mxu0 0.0
      %1132 = vmatpush.msra.mxu0 %v1091
      %1133 = vmatmul.f32.gmra.mxu0 %v1095
      %v1134 = vpop.f32.mrf.mxu0
      %v1135 = vadd.f32 0.0, %v1134
      %1136 = vdwg.mxu0
      %v1137 = vadd.f32 %v1074, %v1115
      %v1138 = vadd.f32 %v1075, %v1135
      %s1139 = scalar_lea.vmem %s2, 40
      %v1140 = vld [vmem:[%s1139] sm:$0xff]
      %v1142 = vsel %vm252, %v1140, 0
      %1144 = vmatpush.msra.mxu0 0.0
      %1145 = vmatpush.msra.mxu0 0.0
      %1146 = vmatpush.msra.mxu0 0.0
      %1147 = vmatpush.msra.mxu0 0.0
      %1148 = vmatpush.msra.mxu0 0.0
      %1149 = vmatpush.msra.mxu0 0.0
      %1150 = vmatpush.msra.mxu0 0.0
      %1151 = vmatpush.msra.mxu0 0.0
      %1152 = vmatpush.msra.mxu0 0.0
      %1153 = vmatpush.msra.mxu0 0.0
      %1154 = vmatpush.msra.mxu0 0.0
      %1155 = vmatpush.msra.mxu0 0.0
      %1156 = vmatpush.msra.mxu0 0.0
      %1157 = vmatpush.msra.mxu0 0.0
      %1158 = vmatpush.msra.mxu0 0.0
      %1159 = vmatpush.msra.mxu0 %v1076
      %1160 = vmatmul.f32.gmra.mxu0 %v1142
      %v1161 = vpop.f32.mrf.mxu0
      %v1162 = vadd.f32 0.0, %v1161
      %1163 = vdwg.mxu0
      %1164 = vmatpush.msra.mxu0 0.0
      %1165 = vmatpush.msra.mxu0 0.0
      %1166 = vmatpush.msra.mxu0 0.0
      %1167 = vmatpush.msra.mxu0 0.0
      %1168 = vmatpush.msra.mxu0 0.0
      %1169 = vmatpush.msra.mxu0 0.0
      %1170 = vmatpush.msra.mxu0 0.0
      %1171 = vmatpush.msra.mxu0 0.0
      %1172 = vmatpush.msra.mxu0 0.0
      %1173 = vmatpush.msra.mxu0 0.0
      %1174 = vmatpush.msra.mxu0 0.0
      %1175 = vmatpush.msra.mxu0 0.0
      %1176 = vmatpush.msra.mxu0 0.0
      %1177 = vmatpush.msra.mxu0 0.0
      %1178 = vmatpush.msra.mxu0 0.0
      %1179 = vmatpush.msra.mxu0 %v1077
      %1180 = vmatmul.f32.gmra.mxu0 %v1142
      %v1181 = vpop.f32.mrf.mxu0
      %v1182 = vadd.f32 0.0, %v1181
      %1183 = vdwg.mxu0
      %v1184 = vadd.f32 %v1137, %v1162
      %v1185 = vadd.f32 %v1138, %v1182
      %v1186 = vsel %vm343, %v1083, %v1088
      %v1187 = vsel %vm344, %v1082, %v1089
      %s1188 = scalar_lea.vmem %s2, 64
      %v1189 = vld [vmem:[%s1188] sm:$0xff]
      %v1191 = vsel %vm252, %v1189, 0
      %1193 = vmatpush.msra.mxu0 0.0
      %1194 = vmatpush.msra.mxu0 0.0
      %1195 = vmatpush.msra.mxu0 0.0
      %1196 = vmatpush.msra.mxu0 0.0
      %1197 = vmatpush.msra.mxu0 0.0
      %1198 = vmatpush.msra.mxu0 0.0
      %1199 = vmatpush.msra.mxu0 0.0
      %1200 = vmatpush.msra.mxu0 0.0
      %1201 = vmatpush.msra.mxu0 0.0
      %1202 = vmatpush.msra.mxu0 0.0
      %1203 = vmatpush.msra.mxu0 0.0
      %1204 = vmatpush.msra.mxu0 0.0
      %1205 = vmatpush.msra.mxu0 0.0
      %1206 = vmatpush.msra.mxu0 0.0
      %1207 = vmatpush.msra.mxu0 0.0
      %1208 = vmatpush.msra.mxu0 %v1186
      %1209 = vmatmul.f32.gmra.mxu0 %v1191
      %v1210 = vpop.f32.mrf.mxu0
      %v1211 = vadd.f32 0.0, %v1210
      %1212 = vdwg.mxu0
      %1213 = vmatpush.msra.mxu0 0.0
      %1214 = vmatpush.msra.mxu0 0.0
      %1215 = vmatpush.msra.mxu0 0.0
      %1216 = vmatpush.msra.mxu0 0.0
      %1217 = vmatpush.msra.mxu0 0.0
      %1218 = vmatpush.msra.mxu0 0.0
      %1219 = vmatpush.msra.mxu0 0.0
      %1220 = vmatpush.msra.mxu0 0.0
      %1221 = vmatpush.msra.mxu0 0.0
      %1222 = vmatpush.msra.mxu0 0.0
      %1223 = vmatpush.msra.mxu0 0.0
      %1224 = vmatpush.msra.mxu0 0.0
      %1225 = vmatpush.msra.mxu0 0.0
      %1226 = vmatpush.msra.mxu0 0.0
      %1227 = vmatpush.msra.mxu0 0.0
      %1228 = vmatpush.msra.mxu0 %v1187
      %1229 = vmatmul.f32.gmra.mxu0 %v1191
      %v1230 = vpop.f32.mrf.mxu0
      %v1231 = vadd.f32 0.0, %v1230
      %1232 = vdwg.mxu0
      %v1233 = vadd.f32 %v1184, %v1211
      %v1234 = vadd.f32 %v1185, %v1231
      %v1235 = vadd.f32 %v1233, %v1234
      %1236 = vadd.xlane.f32.xlu0 %v1235
      %v1237 = vpop.xlane.xlu0 %1236
      %v1238 = vmul.f32 %v1237, %v725
      %v1239 = vmul.f32 %v1233, %v1233
      %v1240 = vmul.f32 %v1234, %v1234
      %v1241 = vadd.f32 %v1239, %v1240
      %1242 = vadd.xlane.f32.xlu0 %v1241
      %v1243 = vpop.xlane.xlu0 %1242
      %v1244 = vmul.f32 %v1243, %v725
      %v1245 = vmul.f32 %v1238, %v1238
      %v1246 = vsub.f32 %v1244, %v1245
      %v1247 = vmax.f32 %v1246, 0.0
      %v1248 = vsub.f32 %v1233, %v1238
      %v1249 = vsub.f32 %v1234, %v1238
      %v1250 = vadd.f32 %v1247, 1e-05
      %v1251 = vrsqrt.pop %v1250
      %v1252 = vmul.f32 %v1251, %v1250
      %v1253 = vmul.f32 %v1252, %v1251
      %v1254 = vmul.f32 0.5, %v1253
      %v1255 = vsub.f32 1.5, %v1254
      %v1256 = vmul.f32 %v1251, %v1255
      %vm1257 = vweird.f32 %v1250
      %vm1258 = vweird.f32 %v1251
      %vm1259 = vmor %vm1257, %vm1258
      %v1260 = vsel %vm1259, %v1251, %v1256
      %v1261 = vmul.f32 %v1248, %v1260
      %v1262 = vmul.f32 %v1249, %v1260
      %v1263 = vadd.f32 %v198, %v1261
      %v1264 = vadd.f32 %v199, %v1262
      %1265 = vst [vmem:[%s197] sm:$0xff] %v1263
      %1266 = vst [vmem:[%s197 + $0x8] sm:$0xff] %v1264
      %p1267 = scmp.lt.s32.totalorder %s15, 1
      %s1268 = scalar_select %p1267, %s15, 1
      %s1269 = smul.addr %s1268, 2
      %s1270 = smul.addr %s1269, 8
      %s1271 = scalar_lea.vmem %s4, %s1270
      // Predicated region
      $region37: #{resnet_block_forward.1} parent=35 // pred_check
        %p1272 = pneg %p122
      $region38: #{resnet_block_forward.1} parent=35 // pred_check_branch
        %1274 = sbr.rel (%p1272) target = $region40
      $region39: #{resnet_block_forward.1} parent=35 // pred_region
        _
      $region40: #{resnet_block_forward.1} parent=35 // pred_fallthru
        _
    $region36: #{resnet_block_forward.1} parent=5 // pred_fallthru
      _
    %p1275 = scmp.le.s32.totalorder 2, %s10
    // Predicated region
    $region41: #{resnet_block_forward.1} parent=5 // pred_check
      %p1276 = pneg %p1275
    $region42: #{resnet_block_forward.1} parent=5 // pred_check_branch
      %1278 = sbr.rel (%p1276) target = $region44
    $region43: #{resnet_block_forward.1} parent=5 // pred_region
      %s1279 = ssub.s32 %s10, 2
      // Predicated region
      $region45: #{resnet_block_forward.1} parent=43 // pred_check
        %p1280 = pneg %p128
      $region46: #{resnet_block_forward.1} parent=43 // pred_check_branch
        %1282 = sbr.rel (%p1280) target = $region48
      $region47: #{resnet_block_forward.1} parent=43 // pred_region
        %p1283 = scmp.lt.s32.totalorder %s16, 1
        %s1284 = scalar_select %p1283, %s16, 1
        %s1285 = smul.addr %s1284, 2
        %s1286 = smul.addr %s1285, 8
        %s1287 = scalar_lea.vmem %s4, %s1286
      $region48: #{resnet_block_forward.1} parent=43 // pred_fallthru
        _
    $region44: #{resnet_block_forward.1} parent=5 // pred_fallthru
      _
  $region6: #{resnet_block_forward.1} parent=0 // loop_footer
    %s14 = sadd.s32 1, %s10
  $region7: #{resnet_block_forward.1} parent=0 // loop_footer_branch
    %9 = sbr.rel target = $region3
  $region8: #{resnet_block_forward.1} parent=0 // loop_exit
    _

</llo_original>
